<compile_context>
chip_gen: v7x
topology: tpu7x:2x2x1
jax: 0.10.0
libtpu: 0.0.40
codegen_flags: <defaults>
</compile_context>

<pallas_src>
import functools

import numpy as np
import jax
import jax.numpy as jnp
from jax.experimental import pallas as pl
from jax.experimental.pallas import tpu as pltpu

# ---- model hyperparameters (constants referenced by the PyTorch module) ----
KERNEL_SIZES = (3, 4, 5)
KERNEL_NUMS = 8
EMBEDDED_DIM = 32
DROP_OUT = 0.5          # identity at inference time
FC_OUT = 256

_LANE = 128             # width of the shared conv-feature slab (lane-dense)


def _round_up(v, m):
    return (v + m - 1) // m * m


# --------------------------------------------------------------------------
# Fused kernel: k-loop conv (all kernel sizes share one 128-wide feature slab)
# + bias + ReLU + masked global max-pool + fc1 + exact softmax.
# --------------------------------------------------------------------------
def _textcnn_fused_kernel(x_ref, wc_ref, bc_ref, mask_ref, fcw_ref, fcb_ref,
                          o_ref, *, ks_max, t_pad, e_dim):
    bn = x_ref.shape[0]

    # Accumulating k-loop conv (no im2col buffer). Each tap is one explicit 2D
    # MXU dot: (bn*t_pad, E) x (E, 128) -> (bn*t_pad, 128) f32. t_pad % 8 == 0,
    # so the (bn, t_pad, E) <-> (bn*t_pad, E) reshapes are tile-aligned.
    x0 = x_ref[:, 0:t_pad, :].reshape(bn * t_pad, e_dim)
    acc = jnp.dot(x0, wc_ref[0], preferred_element_type=jnp.float32)
    for k in range(1, ks_max):                       # static unroll (ks_max = 5)
        xs = x_ref[:, k:k + t_pad, :].reshape(bn * t_pad, e_dim)
        acc = acc + jnp.dot(xs, wc_ref[k], preferred_element_type=jnp.float32)

    y = acc.reshape(bn, t_pad, _LANE)
    y = jnp.maximum(y + bc_ref[...], 0.0)            # conv bias + ReLU
    # NOTE: zeroing invalid/padded windows before the max is only equivalent to
    # the per-branch max_pool1d because ReLU outputs are >= 0. Revisit if the
    # activation ever changes.
    y = y * mask_ref[...]
    feat = jnp.max(y, axis=1)                        # global max pool -> (bn, 128)

    # fc1 (+ bias); rows >= 24 of fcw are zero, so padded feature lanes are inert.
    logits = jnp.dot(feat.astype(fcw_ref.dtype), fcw_ref[...],
                     preferred_element_type=jnp.float32) + fcb_ref[...]

    # softmax(dim=1) with exact division (torch.softmax parity).
    m = jnp.max(logits, axis=1, keepdims=True)
    e = jnp.exp(logits - m)
    o_ref[...] = (e / jnp.sum(e, axis=1, keepdims=True)).astype(o_ref.dtype)


# --------------------------------------------------------------------------
# One-time parameter packing (hoisted out of the per-forward path).
# --------------------------------------------------------------------------
def pack_params(params, compute_dtype=jnp.float32):
    C = KERNEL_NUMS
    ks_max = max(KERNEL_SIZES)
    # conv weights/biases: per-branch (C, ks, E) -> one (ks_max, E, 128) stack of
    # per-tap matrices and one (1, 128) bias; branch i owns lanes i*8 .. i*8+8.
    wc = jnp.zeros((ks_max, EMBEDDED_DIM, _LANE), jnp.float32)
    bc = jnp.zeros((1, _LANE), jnp.float32)
    for i, ks in enumerate(KERNEL_SIZES):
        w = jnp.transpose(params["conv_w"][i], (1, 2, 0))     # (ks, E, C)
        wc = wc.at[:ks, :, i * C:(i + 1) * C].set(w)
        bc = bc.at[0, i * C:(i + 1) * C].set(params["conv_b"][i][0])
    # fc1 weights: (24, 256) -> (128, 256) with zero rows for padded feature lanes.
    fcw = jnp.zeros((_LANE, FC_OUT), jnp.float32)
    fcw = fcw.at[:len(KERNEL_SIZES) * C, :].set(params["fc_w"])
    fcb = params["fc_b"].astype(jnp.float32).reshape(1, FC_OUT)
    return {
        "wc": wc.astype(compute_dtype),
        "bc": bc,
        "fcw": fcw.astype(compute_dtype),
        "fcb": fcb,
        "compute_dtype": compute_dtype,
    }


@functools.lru_cache(maxsize=None)
def _window_mask(L, t_pad):
    # (t_pad, 128) 0/1 validity mask: window t is valid for branch ks iff
    # t < L - ks + 1; padded window rows / padded lanes are zero.
    m = np.zeros((t_pad, _LANE), np.float32)
    for i, ks in enumerate(KERNEL_SIZES):
        m[:L - ks + 1, i * KERNEL_NUMS:(i + 1) * KERNEL_NUMS] = 1.0
    return jnp.asarray(m)


def _choose_block_n(n, lp, t_pad, e_dim, itemsize):
    # Per-batch-row VMEM bytes: double-buffered x block + f32 conv accumulator /
    # activated slab (compiler temporaries) + output row. Budget ~40 MiB so the
    # working set fits v7x's 64 MiB VMEM with headroom (v5e/v6e have 128 MiB).
    per_row = 2 * lp * e_dim * itemsize + 3 * t_pad * _LANE * 4 + 2 * FC_OUT * 4
    budget = 40 * 1024 * 1024
    bn = (budget // per_row) // 8 * 8
    bn = max(8, min(128, int(bn)))
    bn = min(bn, _round_up(n, 8))            # don't pad tiny batches up to 128
    if n > 8:                                # >= 2 grid blocks -> v7x 2nd TC busy
        bn = min(bn, max(8, _round_up(-(-n // 2), 8)))
    return bn


# --------------------------------------------------------------------------
# Forward: only x layout prep runs per call; everything else is the one kernel.
# --------------------------------------------------------------------------
def my_model_forward(packed, x_nchw, *, block_n=None):
    # TODO(synk): training-mode dropout not implemented (identity at inference).
    N, _, L, E = x_nchw.shape
    assert E == EMBEDDED_DIM, (E, EMBEDDED_DIM)
    cdt = packed["compute_dtype"]
    itemsize = jnp.dtype(cdt).itemsize

    ks_max = max(KERNEL_SIZES)
    t_all = L - min(KERNEL_SIZES) + 1          # window count of the widest branch
    t_pad = _round_up(t_all, 8)                # layout-free (bn*T, E) reshape
    Lp = _round_up(t_pad + ks_max - 1, 8)      # enough time steps for all taps

    if block_n is None:
        block_n = _choose_block_n(N, Lp, t_pad, E, itemsize)
    N_pad = _round_up(N, block_n)

    # x: (N,1,L,E) -> (N_pad, Lp, E); no lane padding of the embedding dim.
    x3 = x_nchw[:, 0, :, :].astype(cdt)
    xp = jnp.pad(x3, ((0, N_pad - N), (0, Lp - L), (0, 0)))
    mask = _window_mask(L, t_pad)

    kernel = functools.partial(_textcnn_fused_kernel,
                               ks_max=ks_max, t_pad=t_pad, e_dim=E)

    vmem_est = (2 * block_n * Lp * E * itemsize
                + 3 * block_n * t_pad * _LANE * 4
                + 2 * block_n * FC_OUT * 4
                + 2 * (ks_max * E * _LANE + _LANE + t_pad * _LANE
                       + _LANE * FC_OUT + FC_OUT) * 4)
    vmem_limit = int(min(56 << 20, max(16 << 20, 2 * vmem_est)))

    out = pl.pallas_call(
        kernel,
        out_shape=jax.ShapeDtypeStruct((N_pad, FC_OUT), jnp.float32),
        grid=(N_pad // block_n,),
        in_specs=[
            pl.BlockSpec((block_n, Lp, E), lambda i: (i, 0, 0)),
            pl.BlockSpec((ks_max, E, _LANE), lambda i: (0, 0, 0)),
            pl.BlockSpec((1, _LANE), lambda i: (0, 0)),
            pl.BlockSpec((t_pad, _LANE), lambda i: (0, 0)),
            pl.BlockSpec((_LANE, FC_OUT), lambda i: (0, 0)),
            pl.BlockSpec((1, FC_OUT), lambda i: (0, 0)),
        ],
        out_specs=pl.BlockSpec((block_n, FC_OUT), lambda i: (i, 0)),
        compiler_params=pltpu.CompilerParams(
            dimension_semantics=("parallel",),
            vmem_limit_bytes=vmem_limit),
    )(xp, packed["wc"], packed["bc"], mask, packed["fcw"], packed["fcb"])
    return out[:N]


# --------------------------------------------------------------------------
# Parameter init (deterministic, PyTorch-like uniform fan-in bounds).
# --------------------------------------------------------------------------
def init_params(key):
    params = {"conv_w": [], "conv_b": []}
    for ks in KERNEL_SIZES:
        kw, kb, key = jax.random.split(key, 3)
        fan_in = 1 * ks * EMBEDDED_DIM
        bound = 1.0 / jnp.sqrt(fan_in)
        params["conv_w"].append(
            jax.random.uniform(kw, (KERNEL_NUMS, ks, EMBEDDED_DIM),
                               jnp.float32, -bound, bound))
        params["conv_b"].append(
            jax.random.uniform(kb, (1, KERNEL_NUMS), jnp.float32, -bound, bound))
    kw, kb = jax.random.split(key)
    fc_in = len(KERNEL_SIZES) * KERNEL_NUMS
    bound = 1.0 / jnp.sqrt(fc_in)
    params["fc_w"] = jax.random.uniform(kw, (fc_in, FC_OUT), jnp.float32,
                                        -bound, bound)
    params["fc_b"] = jax.random.uniform(kb, (1, FC_OUT), jnp.float32,
                                        -bound, bound)
    return params


# --------------------------------------------------------------------------
# Pure-JAX reference of the PyTorch forward (eval mode) for validation.
# --------------------------------------------------------------------------
def _reference_forward(params, x_nchw):
    x = x_nchw[:, 0, :, :]                                    # (N, L, E)
    N, L, _ = x.shape
    pooled = []
    for i, ks in enumerate(KERNEL_SIZES):
        w, b = params["conv_w"][i], params["conv_b"][i]       # (C,ks,E), (1,C)
        T = L - ks + 1
        acc = jnp.zeros((N, T, KERNEL_NUMS), jnp.float32)
        for k in range(ks):
            acc = acc + jnp.einsum("nte,ce->ntc", x[:, k:k + T, :], w[:, k, :])
        acc = jnp.maximum(acc + b[0][None, None, :], 0.0)
        pooled.append(jnp.max(acc, axis=1))
    feat = jnp.concatenate(pooled, axis=1)                    # (N, 24)
    logits = feat @ params["fc_w"] + params["fc_b"]
    return jax.nn.softmax(logits, axis=1)


if __name__ == "__main__":
    key = jax.random.PRNGKey(0)
    pkey, xkey = jax.random.split(key)
    params = init_params(pkey)
    packed = pack_params(params)          # packed once, reused across forwards

    N, L = 2, 16
    x = jax.random.normal(xkey, (N, 1, L, EMBEDDED_DIM), jnp.float32)

    out = jax.block_until_ready(my_model_forward(packed, x))

    assert out.shape == (N, FC_OUT), out.shape
    # softmax rows sum to ~1 (exact division now)
    assert jnp.allclose(jnp.sum(out, axis=1), 1.0, atol=1e-5)
    # cross-check against the pure-JAX reference of the PyTorch forward
    ref = _reference_forward(params, x)
    assert jnp.allclose(out, ref, atol=1e-4), float(jnp.max(jnp.abs(out - ref)))
    print("KERNEL_OK")
</pallas_src>

<mosaic_0001>
module attributes {stable_mosaic.version = 11 : i64} {
  func.func @_textcnn_fused_kernel(%arg0: i32, %arg1: memref<8x24x32xf32, #tpu.memory_space<vmem>>, %arg2: memref<5x32x128xf32, #tpu.memory_space<vmem>>, %arg3: memref<1x128xf32, #tpu.memory_space<vmem>>, %arg4: memref<16x128xf32, #tpu.memory_space<vmem>>, %arg5: memref<128x256xf32, #tpu.memory_space<vmem>>, %arg6: memref<1x256xf32, #tpu.memory_space<vmem>>, %arg7: memref<8x256xf32, #tpu.memory_space<vmem>>) attributes {dimension_semantics = [#tpu.dimension_semantics<parallel>], iteration_bounds = array<i64: 1>, scalar_prefetch = 0 : i64, scratch_operands = 0 : i64, tpu.core_type = #tpu.core_type<tc>, window_params = [{transform_indices = @transform_0, window_bounds = array<i64: 8, 24, 32>}, {pipeline_mode = #tpu.pipeline_mode<synchronous>, transform_indices = @transform_1, window_bounds = array<i64: 5, 32, 128>}, {pipeline_mode = #tpu.pipeline_mode<synchronous>, transform_indices = @transform_2, window_bounds = array<i64: 1, 128>}, {pipeline_mode = #tpu.pipeline_mode<synchronous>, transform_indices = @transform_3, window_bounds = array<i64: 16, 128>}, {pipeline_mode = #tpu.pipeline_mode<synchronous>, transform_indices = @transform_4, window_bounds = array<i64: 128, 256>}, {pipeline_mode = #tpu.pipeline_mode<synchronous>, transform_indices = @transform_5, window_bounds = array<i64: 1, 256>}, {transform_indices = @transform_6, window_bounds = array<i64: 8, 256>}]} {
    %c0 = arith.constant 0 : index
    %c0_0 = arith.constant 0 : index
    %c0_1 = arith.constant 0 : index
    %0 = vector.load %arg1[%c0, %c0_0, %c0_1] : memref<8x24x32xf32, #tpu.memory_space<vmem>>, vector<8x16x32xf32>
    %1 = vector.shape_cast %0 : vector<8x16x32xf32> to vector<128x32xf32>
    %c0_2 = arith.constant 0 : index
    %c0_3 = arith.constant 0 : index
    %c0_4 = arith.constant 0 : index
    %2 = vector.load %arg2[%c0_2, %c0_3, %c0_4] : memref<5x32x128xf32, #tpu.memory_space<vmem>>, vector<1x32x128xf32>
    %3 = vector.shape_cast %2 : vector<1x32x128xf32> to vector<32x128xf32>
    %cst = arith.constant dense<0.000000e+00> : vector<128x128xf32>
    %4 = tpu.matmul %1, %3, %cst {dimension_numbers = #tpu.dot_dimension_numbers<[1], [0], [0], [1], [0, 0, 1, 1], [], []>} : vector<128x32xf32>, vector<32x128xf32>, vector<128x128xf32> -> vector<128x128xf32>
    %c0_5 = arith.constant 0 : index
    %c1 = arith.constant 1 : index
    %c0_6 = arith.constant 0 : index
    %5 = vector.load %arg1[%c0_5, %c1, %c0_6] : memref<8x24x32xf32, #tpu.memory_space<vmem>>, vector<8x16x32xf32>
    %6 = vector.shape_cast %5 : vector<8x16x32xf32> to vector<128x32xf32>
    %c1_7 = arith.constant 1 : index
    %c0_8 = arith.constant 0 : index
    %c0_9 = arith.constant 0 : index
    %7 = vector.load %arg2[%c1_7, %c0_8, %c0_9] : memref<5x32x128xf32, #tpu.memory_space<vmem>>, vector<1x32x128xf32>
    %8 = vector.shape_cast %7 : vector<1x32x128xf32> to vector<32x128xf32>
    %cst_10 = arith.constant dense<0.000000e+00> : vector<128x128xf32>
    %9 = tpu.matmul %6, %8, %cst_10 {dimension_numbers = #tpu.dot_dimension_numbers<[1], [0], [0], [1], [0, 0, 1, 1], [], []>} : vector<128x32xf32>, vector<32x128xf32>, vector<128x128xf32> -> vector<128x128xf32>
    %10 = arith.addf %4, %9 : vector<128x128xf32>
    %c0_11 = arith.constant 0 : index
    %c2 = arith.constant 2 : index
    %c0_12 = arith.constant 0 : index
    %11 = vector.load %arg1[%c0_11, %c2, %c0_12] : memref<8x24x32xf32, #tpu.memory_space<vmem>>, vector<8x16x32xf32>
    %12 = vector.shape_cast %11 : vector<8x16x32xf32> to vector<128x32xf32>
    %c2_13 = arith.constant 2 : index
    %c0_14 = arith.constant 0 : index
    %c0_15 = arith.constant 0 : index
    %13 = vector.load %arg2[%c2_13, %c0_14, %c0_15] : memref<5x32x128xf32, #tpu.memory_space<vmem>>, vector<1x32x128xf32>
    %14 = vector.shape_cast %13 : vector<1x32x128xf32> to vector<32x128xf32>
    %cst_16 = arith.constant dense<0.000000e+00> : vector<128x128xf32>
    %15 = tpu.matmul %12, %14, %cst_16 {dimension_numbers = #tpu.dot_dimension_numbers<[1], [0], [0], [1], [0, 0, 1, 1], [], []>} : vector<128x32xf32>, vector<32x128xf32>, vector<128x128xf32> -> vector<128x128xf32>
    %16 = arith.addf %10, %15 : vector<128x128xf32>
    %c0_17 = arith.constant 0 : index
    %c3 = arith.constant 3 : index
    %c0_18 = arith.constant 0 : index
    %17 = vector.load %arg1[%c0_17, %c3, %c0_18] : memref<8x24x32xf32, #tpu.memory_space<vmem>>, vector<8x16x32xf32>
    %18 = vector.shape_cast %17 : vector<8x16x32xf32> to vector<128x32xf32>
    %c3_19 = arith.constant 3 : index
    %c0_20 = arith.constant 0 : index
    %c0_21 = arith.constant 0 : index
    %19 = vector.load %arg2[%c3_19, %c0_20, %c0_21] : memref<5x32x128xf32, #tpu.memory_space<vmem>>, vector<1x32x128xf32>
    %20 = vector.shape_cast %19 : vector<1x32x128xf32> to vector<32x128xf32>
    %cst_22 = arith.constant dense<0.000000e+00> : vector<128x128xf32>
    %21 = tpu.matmul %18, %20, %cst_22 {dimension_numbers = #tpu.dot_dimension_numbers<[1], [0], [0], [1], [0, 0, 1, 1], [], []>} : vector<128x32xf32>, vector<32x128xf32>, vector<128x128xf32> -> vector<128x128xf32>
    %22 = arith.addf %16, %21 : vector<128x128xf32>
    %c0_23 = arith.constant 0 : index
    %c4 = arith.constant 4 : index
    %c0_24 = arith.constant 0 : index
    %23 = vector.load %arg1[%c0_23, %c4, %c0_24] : memref<8x24x32xf32, #tpu.memory_space<vmem>>, vector<8x16x32xf32>
    %24 = vector.shape_cast %23 : vector<8x16x32xf32> to vector<128x32xf32>
    %c4_25 = arith.constant 4 : index
    %c0_26 = arith.constant 0 : index
    %c0_27 = arith.constant 0 : index
    %25 = vector.load %arg2[%c4_25, %c0_26, %c0_27] : memref<5x32x128xf32, #tpu.memory_space<vmem>>, vector<1x32x128xf32>
    %26 = vector.shape_cast %25 : vector<1x32x128xf32> to vector<32x128xf32>
    %cst_28 = arith.constant dense<0.000000e+00> : vector<128x128xf32>
    %27 = tpu.matmul %24, %26, %cst_28 {dimension_numbers = #tpu.dot_dimension_numbers<[1], [0], [0], [1], [0, 0, 1, 1], [], []>} : vector<128x32xf32>, vector<32x128xf32>, vector<128x128xf32> -> vector<128x128xf32>
    %28 = arith.addf %22, %27 : vector<128x128xf32>
    %29 = vector.shape_cast %28 : vector<128x128xf32> to vector<8x16x128xf32>
    %c0_29 = arith.constant 0 : index
    %c0_30 = arith.constant 0 : index
    %30 = vector.load %arg3[%c0_29, %c0_30] : memref<1x128xf32, #tpu.memory_space<vmem>>, vector<1x128xf32>
    %31 = vector.shape_cast %30 : vector<1x128xf32> to vector<1x1x128xf32>
    %32 = vector.broadcast %31 : vector<1x1x128xf32> to vector<8x16x128xf32>
    %33 = arith.addf %29, %32 : vector<8x16x128xf32>
    %cst_31 = arith.constant 0.000000e+00 : f32
    %34 = vector.broadcast %cst_31 : f32 to vector<8x16x128xf32>
    %35 = arith.maximumf %33, %34 : vector<8x16x128xf32>
    %c0_32 = arith.constant 0 : index
    %c0_33 = arith.constant 0 : index
    %36 = vector.load %arg4[%c0_32, %c0_33] : memref<16x128xf32, #tpu.memory_space<vmem>>, vector<16x128xf32>
    %37 = vector.shape_cast %36 : vector<16x128xf32> to vector<1x16x128xf32>
    %38 = vector.broadcast %37 : vector<1x16x128xf32> to vector<8x16x128xf32>
    %39 = arith.mulf %35, %38 : vector<8x16x128xf32>
    %cst_34 = arith.constant dense<0xFF800000> : vector<8x128xf32>
    %40 = vector.multi_reduction <maximumf>, %39, %cst_34 [1] : vector<8x16x128xf32> to vector<8x128xf32>
    %c0_35 = arith.constant 0 : index
    %c0_36 = arith.constant 0 : index
    %41 = vector.load %arg5[%c0_35, %c0_36] : memref<128x256xf32, #tpu.memory_space<vmem>>, vector<128x256xf32>
    %cst_37 = arith.constant dense<0.000000e+00> : vector<8x256xf32>
    %42 = tpu.matmul %40, %41, %cst_37 {dimension_numbers = #tpu.dot_dimension_numbers<[1], [0], [0], [1], [0, 0, 1, 1], [], []>} : vector<8x128xf32>, vector<128x256xf32>, vector<8x256xf32> -> vector<8x256xf32>
    %c0_38 = arith.constant 0 : index
    %c0_39 = arith.constant 0 : index
    %43 = vector.load %arg6[%c0_38, %c0_39] : memref<1x256xf32, #tpu.memory_space<vmem>>, vector<1x256xf32>
    %44 = vector.broadcast %43 : vector<1x256xf32> to vector<8x256xf32>
    %45 = arith.addf %42, %44 : vector<8x256xf32>
    %cst_40 = arith.constant dense<0xFF800000> : vector<8xf32>
    %46 = vector.multi_reduction <maximumf>, %45, %cst_40 [1] : vector<8x256xf32> to vector<8xf32>
    %47 = vector.shape_cast %46 : vector<8xf32> to vector<8x1xf32>
    %48 = vector.broadcast %47 : vector<8x1xf32> to vector<8x256xf32>
    %49 = arith.subf %45, %48 : vector<8x256xf32>
    %50 = math.exp %49 : vector<8x256xf32>
    %cst_41 = arith.constant dense<0.000000e+00> : vector<8xf32>
    %51 = vector.multi_reduction <add>, %50, %cst_41 [1] : vector<8x256xf32> to vector<8xf32>
    %52 = vector.shape_cast %51 : vector<8xf32> to vector<8x1xf32>
    %53 = vector.broadcast %52 : vector<8x1xf32> to vector<8x256xf32>
    %54 = arith.divf %50, %53 : vector<8x256xf32>
    %c0_42 = arith.constant 0 : index
    %c0_43 = arith.constant 0 : index
    %55 = vector.load %arg7[%c0_42, %c0_43] : memref<8x256xf32, #tpu.memory_space<vmem>>, vector<8x256xf32>
    tpu.vector_store %arg7[%c0_42, %c0_43], %54 {strides = array<i32>} : memref<8x256xf32, #tpu.memory_space<vmem>>, vector<8x256xf32>,
    return
  }
  func.func @transform_0(%arg0: i32) -> (i32, i32, i32) {
    %c0_i32 = arith.constant 0 : i32
    %c0_i32_0 = arith.constant 0 : i32
    %c0_i32_1 = arith.constant 0 : i32
    return %arg0, %c0_i32, %c0_i32_0 : i32, i32, i32
  }
  func.func @transform_1(%arg0: i32) -> (i32, i32, i32) {
    %c0_i32 = arith.constant 0 : i32
    %c0_i32_0 = arith.constant 0 : i32
    %c0_i32_1 = arith.constant 0 : i32
    %c0_i32_2 = arith.constant 0 : i32
    return %c0_i32, %c0_i32_0, %c0_i32_1 : i32, i32, i32
  }
  func.func @transform_2(%arg0: i32) -> (i32, i32) {
    %c0_i32 = arith.constant 0 : i32
    %c0_i32_0 = arith.constant 0 : i32
    %c0_i32_1 = arith.constant 0 : i32
    return %c0_i32, %c0_i32_0 : i32, i32
  }
  func.func @transform_3(%arg0: i32) -> (i32, i32) {
    %c0_i32 = arith.constant 0 : i32
    %c0_i32_0 = arith.constant 0 : i32
    %c0_i32_1 = arith.constant 0 : i32
    return %c0_i32, %c0_i32_0 : i32, i32
  }
  func.func @transform_4(%arg0: i32) -> (i32, i32) {
    %c0_i32 = arith.constant 0 : i32
    %c0_i32_0 = arith.constant 0 : i32
    %c0_i32_1 = arith.constant 0 : i32
    return %c0_i32, %c0_i32_0 : i32, i32
  }
  func.func @transform_5(%arg0: i32) -> (i32, i32) {
    %c0_i32 = arith.constant 0 : i32
    %c0_i32_0 = arith.constant 0 : i32
    %c0_i32_1 = arith.constant 0 : i32
    return %c0_i32, %c0_i32_0 : i32, i32
  }
  func.func @transform_6(%arg0: i32) -> (i32, i32) {
    %c0_i32 = arith.constant 0 : i32
    %c0_i32_0 = arith.constant 0 : i32
    return %arg0, %c0_i32 : i32, i32
  }
}

</mosaic_0001>

<llo_original>
// kernel: tpu_custom_call.1
$region0: #{tpu_custom_call.1}
  #allocation0 [shape = 'u32[]', space=smem, size = 0x4, offset = 0x4, fixed_abs, tag = 'smem constant byte address 0x4 - core index']
  #allocation1 [shape = 'u32[144,128]{1,0:T(1,128)}', space=vmem, size = 0x12000, scoped, tag = 'internal scratch']
  %s0 = inlined_call_operand.hbm [shape: f32[8,24,32], index: 0, kind: input, shape index: {}]
  %s1 = inlined_call_operand.hbm [shape: f32[5,32,128], index: 1, kind: input, shape index: {}]
  %s2 = inlined_call_operand.vmem [shape: f32[1,128], index: 2, kind: input, shape index: {}]
  %s3 = inlined_call_operand.hbm [shape: f32[16,128], index: 3, kind: input, shape index: {}]
  %s4 = inlined_call_operand.hbm [shape: f32[128,256], index: 4, kind: input, shape index: {}]
  %s5 = inlined_call_operand.vmem [shape: f32[1,256], index: 5, kind: input, shape index: {}]
  %s6 = inlined_call_operand.hbm [shape: f32[8,256], index: 6, kind: output, shape index: {}]
  %s7 = sld [smem:[#allocation0]]
  $region50: #{tpu_custom_call.1} parent=0
    _
  %s9 = ssub.s32 1, %s7
  %s10 = scalar_select 0, %s9, %s7
  $region1: #{tpu_custom_call.1} parent=0
    #allocation2 [shape = 'u8[98304]{0}', space=vmem, size = 0x18000, scoped, tag = 'input window, operand 0, single buffered']
    #allocation3 [shape = 's32[1]{0}', space=sflag, size = 0x4, scoped, tag = 'scoped memory for tpu_custom_call.1']
    #allocation4 [shape = 's32[1]{0}', space=sflag, size = 0x4, scoped, tag = 'scoped memory for tpu_custom_call.1']
    #allocation5 [shape = 'u8[81920]{0}', space=vmem, size = 0x14000, scoped, tag = 'input window, operand 1, single buffered']
    #allocation6 [shape = 's32[1]{0}', space=sflag, size = 0x4, scoped, tag = 'scoped memory for tpu_custom_call.1']
    #allocation7 [shape = 'u8[8192]{0}', space=vmem, size = 0x2000, scoped, tag = 'input window, operand 3, single buffered']
    #allocation8 [shape = 'u8[131072]{0}', space=vmem, size = 0x20000, scoped, tag = 'input window, operand 4, single buffered']
    #allocation9 [shape = 's32[1]{0}', space=sflag, size = 0x4, scoped, tag = 'scoped memory for tpu_custom_call.1']
    #allocation10 [shape = 'u8[8192]{0}', space=vmem, size = 0x2000, scoped, tag = 'output window, operand 0, single buffered']
    %11 = vsyncpa [#allocation3], 0
    %12 = vsyncpa [#allocation6], 0
    %13 = vsyncpa [#allocation9], 0
    %14 = vsyncpa [#allocation4], 0
    // Predicated region
    $region2: #{tpu_custom_call.1} parent=1 // pred_check
      _
    $region3: #{tpu_custom_call.1} parent=1 // pred_check_branch
      %16 = sbr.rel (0) target = $region5
    $region4: #{tpu_custom_call.1} parent=1 // pred_region
      %s18 = ssub.s32 3072, 3072
      %19 = vsyncadd [#allocation3], %s18
      %s20 = sshll.u32 [#allocation2], 4
      %s21 = int_to_ptr.vmem [resolvable:$true] %s20
      %26 = dma.hbm_to_vmem [thread:$0]  %s0, 3072, %s21, [#allocation3], 128, 128, 8
    $region5: #{tpu_custom_call.1} parent=1 // pred_fallthru
      _
    // Predicated region
    $region6: #{tpu_custom_call.1} parent=1 // pred_check
      _
    $region7: #{tpu_custom_call.1} parent=1 // pred_check_branch
      %28 = sbr.rel (0) target = $region9
    $region8: #{tpu_custom_call.1} parent=1 // pred_region
      %s30 = ssub.s32 2560, 2560
      %31 = vsyncadd [#allocation6], %s30
      %s32 = sshll.u32 [#allocation5], 4
      %s33 = int_to_ptr.vmem [resolvable:$true] %s32
      %38 = dma.hbm_to_vmem [thread:$0]  %s1, 2560, %s33, [#allocation6], 128, 128, 8
    $region9: #{tpu_custom_call.1} parent=1 // pred_fallthru
      _
    // Predicated region
    $region10: #{tpu_custom_call.1} parent=1 // pred_check
      _
    $region11: #{tpu_custom_call.1} parent=1 // pred_check_branch
      %40 = sbr.rel (0) target = $region13
    $region12: #{tpu_custom_call.1} parent=1 // pred_region
      _
    $region13: #{tpu_custom_call.1} parent=1 // pred_fallthru
      _
    // Predicated region
    $region14: #{tpu_custom_call.1} parent=1 // pred_check
      _
    $region15: #{tpu_custom_call.1} parent=1 // pred_check_branch
      %42 = sbr.rel (0) target = $region17
    $region16: #{tpu_custom_call.1} parent=1 // pred_region
      %s44 = ssub.s32 256, 256
      %45 = vsyncadd [#allocation6], %s44
      %s46 = sshll.u32 [#allocation7], 4
      %s47 = int_to_ptr.vmem [resolvable:$true] %s46
      %52 = dma.hbm_to_vmem [thread:$0]  %s3, 256, %s47, [#allocation6], 128, 128, 8
    $region17: #{tpu_custom_call.1} parent=1 // pred_fallthru
      _
    // Predicated region
    $region18: #{tpu_custom_call.1} parent=1 // pred_check
      _
    $region19: #{tpu_custom_call.1} parent=1 // pred_check_branch
      %54 = sbr.rel (0) target = $region21
    $region20: #{tpu_custom_call.1} parent=1 // pred_region
      %s56 = ssub.s32 4096, 4096
      %57 = vsyncadd [#allocation9], %s56
      %s58 = sshll.u32 [#allocation8], 4
      %s59 = int_to_ptr.vmem [resolvable:$true] %s58
      %64 = dma.hbm_to_vmem [thread:$0]  %s4, 4096, %s59, [#allocation9], 256, 256, 16
    $region21: #{tpu_custom_call.1} parent=1 // pred_fallthru
      _
    // Predicated region
    $region22: #{tpu_custom_call.1} parent=1 // pred_check
      _
    $region23: #{tpu_custom_call.1} parent=1 // pred_check_branch
      %66 = sbr.rel (0) target = $region25
    $region24: #{tpu_custom_call.1} parent=1 // pred_region
      _
    $region25: #{tpu_custom_call.1} parent=1 // pred_fallthru
      _
    // Predicated region
    $region26: #{tpu_custom_call.1} parent=1 // pred_check
      _
    $region27: #{tpu_custom_call.1} parent=1 // pred_check_branch
      %68 = sbr.rel (0) target = $region29
    $region28: #{tpu_custom_call.1} parent=1 // pred_region
      %69 = dma.done [#allocation3], 3072
    $region29: #{tpu_custom_call.1} parent=1 // pred_fallthru
      _
    // Predicated region
    $region30: #{tpu_custom_call.1} parent=1 // pred_check
      _
    $region31: #{tpu_custom_call.1} parent=1 // pred_check_branch
      %71 = sbr.rel (0) target = $region33
    $region32: #{tpu_custom_call.1} parent=1 // pred_region
      %72 = dma.done [#allocation6], 2560
    $region33: #{tpu_custom_call.1} parent=1 // pred_fallthru
      _
    // Predicated region
    $region34: #{tpu_custom_call.1} parent=1 // pred_check
      _
    $region35: #{tpu_custom_call.1} parent=1 // pred_check_branch
      %74 = sbr.rel (0) target = $region37
    $region36: #{tpu_custom_call.1} parent=1 // pred_region
      %75 = dma.done [#allocation6], 256
    $region37: #{tpu_custom_call.1} parent=1 // pred_fallthru
      _
    // Predicated region
    $region38: #{tpu_custom_call.1} parent=1 // pred_check
      _
    $region39: #{tpu_custom_call.1} parent=1 // pred_check_branch
      %77 = sbr.rel (0) target = $region41
    $region40: #{tpu_custom_call.1} parent=1 // pred_region
      %78 = dma.done [#allocation9], 4096
    $region41: #{tpu_custom_call.1} parent=1 // pred_fallthru
      _
    %v79 = vld [vmem:[#allocation2] sm:$0xff]
    %v80 = vld [vmem:[#allocation2 + $0x8] sm:$0xff]
    %v81 = vld [vmem:[#allocation2 + $0x18] sm:$0xff]
    %v82 = vld [vmem:[#allocation2 + $0x20] sm:$0xff]
    %v83 = vld [vmem:[#allocation2 + $0x30] sm:$0xff]
    %v84 = vld [vmem:[#allocation2 + $0x38] sm:$0xff]
    %v85 = vld [vmem:[#allocation2 + $0x48] sm:$0xff]
    %v86 = vld [vmem:[#allocation2 + $0x50] sm:$0xff]
    %v87 = vld [vmem:[#allocation2 + $0x60] sm:$0xff]
    %v88 = vld [vmem:[#allocation2 + $0x68] sm:$0xff]
    %v89 = vld [vmem:[#allocation2 + $0x78] sm:$0xff]
    %v90 = vld [vmem:[#allocation2 + $0x80] sm:$0xff]
    %v91 = vld [vmem:[#allocation2 + $0x90] sm:$0xff]
    %v92 = vld [vmem:[#allocation2 + $0x98] sm:$0xff]
    %v93 = vld [vmem:[#allocation2 + $0xa8] sm:$0xff]
    %v94 = vld [vmem:[#allocation2 + $0xb0] sm:$0xff]
    %v95 = vld [vmem:[#allocation5] sm:$0xff]
    %v96 = vld [vmem:[#allocation5 + $0x8] sm:$0xff]
    %v97 = vld [vmem:[#allocation5 + $0x10] sm:$0xff]
    %v98 = vld [vmem:[#allocation5 + $0x18] sm:$0xff]
    %v99 = vld [vmem:[#allocation2 + $0x1] sm:$0xff]
    %v100 = vld [vmem:[#allocation2 + $0x9] sm:$0xff]
    %v101 = vld [vmem:[#allocation2 + $0x19] sm:$0xff]
    %v102 = vld [vmem:[#allocation2 + $0x21] sm:$0xff]
    %v103 = vld [vmem:[#allocation2 + $0x31] sm:$0xff]
    %v104 = vld [vmem:[#allocation2 + $0x39] sm:$0xff]
    %v105 = vld [vmem:[#allocation2 + $0x49] sm:$0xff]
    %v106 = vld [vmem:[#allocation2 + $0x51] sm:$0xff]
    %v107 = vld [vmem:[#allocation2 + $0x61] sm:$0xff]
    %v108 = vld [vmem:[#allocation2 + $0x69] sm:$0xff]
    %v109 = vld [vmem:[#allocation2 + $0x79] sm:$0xff]
    %v110 = vld [vmem:[#allocation2 + $0x81] sm:$0xff]
    %v111 = vld [vmem:[#allocation2 + $0x91] sm:$0xff]
    %v112 = vld [vmem:[#allocation2 + $0x99] sm:$0xff]
    %v113 = vld [vmem:[#allocation2 + $0xa9] sm:$0xff]
    %v114 = vld [vmem:[#allocation2 + $0xb1] sm:$0xff]
    %s115 = scalar_lea.vmem [#allocation5], 32
    %v116 = vld [vmem:[%s115] sm:$0xff]
    %v117 = vld [vmem:[%s115 + $0x8] sm:$0xff]
    %v118 = vld [vmem:[%s115 + $0x10] sm:$0xff]
    %v119 = vld [vmem:[%s115 + $0x18] sm:$0xff]
    %vm120 = vcmask 261120
    %v122 = vsel %vm120, %v99, 0
    %v125 = vsel %vm120, %v100, 0
    %v128 = vsel %vm120, %v101, 0
    %v131 = vsel %vm120, %v102, 0
    %v134 = vsel %vm120, %v103, 0
    %v137 = vsel %vm120, %v104, 0
    %v140 = vsel %vm120, %v105, 0
    %v143 = vsel %vm120, %v106, 0
    %v146 = vsel %vm120, %v107, 0
    %v149 = vsel %vm120, %v108, 0
    %v152 = vsel %vm120, %v109, 0
    %v155 = vsel %vm120, %v110, 0
    %v158 = vsel %vm120, %v111, 0
    %v161 = vsel %vm120, %v112, 0
    %v164 = vsel %vm120, %v113, 0
    %v167 = vsel %vm120, %v114, 0
    %169 = vmatprep.subr.mxu0 0.0
    %170 = vmatpush1.msra.mxu0 %v116
    %171 = vmatprep.subr.mxu0 0.0
    %172 = vmatpush1.msra.mxu0 %v117
    %173 = vmatprep.subr.mxu0 0.0
    %174 = vmatpush1.msra.mxu0 %v118
    %175 = vmatprep.subr.mxu0 0.0
    %176 = vmatpush1.msra.mxu0 %v119
    %177 = vmatprep.subr.mxu0 0.0
    %178 = vmatpush1.msra.mxu0 0.0
    %179 = vmatprep.subr.mxu0 0.0
    %180 = vmatpush1.msra.mxu0 0.0
    %181 = vmatprep.subr.mxu0 0.0
    %182 = vmatpush1.msra.mxu0 0.0
    %183 = vmatprep.subr.mxu0 0.0
    %184 = vmatpush1.msra.mxu0 0.0
    %185 = vmatprep.subr.mxu0 0.0
    %186 = vmatpush1.msra.mxu0 0.0
    %187 = vmatprep.subr.mxu0 0.0
    %188 = vmatpush1.msra.mxu0 0.0
    %189 = vmatprep.subr.mxu0 0.0
    %190 = vmatpush1.msra.mxu0 0.0
    %191 = vmatprep.subr.mxu0 0.0
    %192 = vmatpush1.msra.mxu0 0.0
    %193 = vmatprep.subr.mxu0 0.0
    %194 = vmatpush1.msra.mxu0 0.0
    %195 = vmatprep.subr.mxu0 0.0
    %196 = vmatpush1.msra.mxu0 0.0
    %197 = vmatprep.subr.mxu0 0.0
    %198 = vmatpush1.msra.mxu0 0.0
    %199 = vmatprep.subr.mxu0 0.0
    %200 = vmatpush1.msra.mxu0 0.0
    %201 = vmatprep.subr.mxu0 0.0
    %202 = vmatpush1.msra.mxu0 0.0
    %203 = vmatprep.subr.mxu0 0.0
    %204 = vmatpush1.msra.mxu0 0.0
    %205 = vmatprep.subr.mxu0 0.0
    %206 = vmatpush1.msra.mxu0 0.0
    %207 = vmatprep.subr.mxu0 0.0
    %208 = vmatpush1.msra.mxu0 0.0
    %209 = vmatprep.subr.mxu0 0.0
    %210 = vmatpush1.msra.mxu0 0.0
    %211 = vmatprep.subr.mxu0 0.0
    %212 = vmatpush1.msra.mxu0 0.0
    %213 = vmatprep.subr.mxu0 0.0
    %214 = vmatpush1.msra.mxu0 0.0
    %215 = vmatprep.subr.mxu0 0.0
    %216 = vmatpush1.msra.mxu0 0.0
    %217 = vmatprep.subr.mxu0 0.0
    %218 = vmatpush1.msra.mxu0 0.0
    %219 = vmatprep.subr.mxu0 0.0
    %220 = vmatpush1.msra.mxu0 0.0
    %221 = vmatprep.subr.mxu0 0.0
    %222 = vmatpush1.msra.mxu0 0.0
    %223 = vmatprep.subr.mxu0 0.0
    %224 = vmatpush1.msra.mxu0 0.0
    %225 = vmatprep.subr.mxu0 0.0
    %226 = vmatpush1.msra.mxu0 0.0
    %227 = vmatprep.subr.mxu0 0.0
    %228 = vmatpush1.msra.mxu0 0.0
    %229 = vmatprep.subr.mxu0 0.0
    %230 = vmatpush1.msra.mxu0 0.0
    %231 = vmatprep.subr.mxu0 0.0
    %232 = vmatpush1.msra.mxu0 0.0
    %233 = vmatprep.mubr.f32.mxu0 0.0
    %234 = vmatmul.mubr.f32.gmra.mrb[0].mxu0 %v122
    %v235 = vpop.f32.mrb[0].mxu0
    %v236 = vadd.f32 0.0, %v235
    %v237 = vpop.f32.mrb[0].mxu0
    %238 = vmatprep.mubr.f32.mxu0 0.0
    %239 = vmatmul.mubr.f32.gmra.mrb[0].mxu0 %v125
    %v240 = vpop.f32.mrb[0].mxu0
    %v241 = vadd.f32 0.0, %v240
    %v242 = vpop.f32.mrb[0].mxu0
    %243 = vmatprep.mubr.f32.mxu0 0.0
    %244 = vmatmul.mubr.f32.gmra.mrb[0].mxu0 %v128
    %v245 = vpop.f32.mrb[0].mxu0
    %v246 = vadd.f32 0.0, %v245
    %v247 = vpop.f32.mrb[0].mxu0
    %248 = vmatprep.mubr.f32.mxu0 0.0
    %249 = vmatmul.mubr.f32.gmra.mrb[0].mxu0 %v131
    %v250 = vpop.f32.mrb[0].mxu0
    %v251 = vadd.f32 0.0, %v250
    %v252 = vpop.f32.mrb[0].mxu0
    %253 = vmatprep.mubr.f32.mxu0 0.0
    %254 = vmatmul.mubr.f32.gmra.mrb[0].mxu0 %v134
    %v255 = vpop.f32.mrb[0].mxu0
    %v256 = vadd.f32 0.0, %v255
    %v257 = vpop.f32.mrb[0].mxu0
    %258 = vmatprep.mubr.f32.mxu0 0.0
    %259 = vmatmul.mubr.f32.gmra.mrb[0].mxu0 %v137
    %v260 = vpop.f32.mrb[0].mxu0
    %v261 = vadd.f32 0.0, %v260
    %v262 = vpop.f32.mrb[0].mxu0
    %263 = vmatprep.mubr.f32.mxu0 0.0
    %264 = vmatmul.mubr.f32.gmra.mrb[0].mxu0 %v140
    %v265 = vpop.f32.mrb[0].mxu0
    %v266 = vadd.f32 0.0, %v265
    %v267 = vpop.f32.mrb[0].mxu0
    %268 = vmatprep.mubr.f32.mxu0 0.0
    %269 = vmatmul.mubr.f32.gmra.mrb[0].mxu0 %v143
    %v270 = vpop.f32.mrb[0].mxu0
    %v271 = vadd.f32 0.0, %v270
    %v272 = vpop.f32.mrb[0].mxu0
    %273 = vmatprep.mubr.f32.mxu0 0.0
    %274 = vmatmul.mubr.f32.gmra.mrb[0].mxu0 %v146
    %v275 = vpop.f32.mrb[0].mxu0
    %v276 = vadd.f32 0.0, %v275
    %v277 = vpop.f32.mrb[0].mxu0
    %278 = vmatprep.mubr.f32.mxu0 0.0
    %279 = vmatmul.mubr.f32.gmra.mrb[0].mxu0 %v149
    %v280 = vpop.f32.mrb[0].mxu0
    %v281 = vadd.f32 0.0, %v280
    %v282 = vpop.f32.mrb[0].mxu0
    %283 = vmatprep.mubr.f32.mxu0 0.0
    %284 = vmatmul.mubr.f32.gmra.mrb[0].mxu0 %v152
    %v285 = vpop.f32.mrb[0].mxu0
    %v286 = vadd.f32 0.0, %v285
    %v287 = vpop.f32.mrb[0].mxu0
    %288 = vmatprep.mubr.f32.mxu0 0.0
    %289 = vmatmul.mubr.f32.gmra.mrb[0].mxu0 %v155
    %v290 = vpop.f32.mrb[0].mxu0
    %v291 = vadd.f32 0.0, %v290
    %v292 = vpop.f32.mrb[0].mxu0
    %293 = vmatprep.mubr.f32.mxu0 0.0
    %294 = vmatmul.mubr.f32.gmra.mrb[0].mxu0 %v158
    %v295 = vpop.f32.mrb[0].mxu0
    %v296 = vadd.f32 0.0, %v295
    %v297 = vpop.f32.mrb[0].mxu0
    %298 = vmatprep.mubr.f32.mxu0 0.0
    %299 = vmatmul.mubr.f32.gmra.mrb[0].mxu0 %v161
    %v300 = vpop.f32.mrb[0].mxu0
    %v301 = vadd.f32 0.0, %v300
    %v302 = vpop.f32.mrb[0].mxu0
    %303 = vmatprep.mubr.f32.mxu0 0.0
    %304 = vmatmul.mubr.f32.gmra.mrb[0].mxu0 %v164
    %v305 = vpop.f32.mrb[0].mxu0
    %v306 = vadd.f32 0.0, %v305
    %v307 = vpop.f32.mrb[0].mxu0
    %308 = vmatprep.mubr.f32.mxu0 0.0
    %309 = vmatmul.mubr.f32.gmra.mrb[0].mxu0 %v167
    %v310 = vpop.f32.mrb[0].mxu0
    %v311 = vadd.f32 0.0, %v310
    %v312 = vpop.f32.mrb[0].mxu0
    %313 = vdwg.mxu0
    %v315 = vsel %vm120, %v79, 0
    %v318 = vsel %vm120, %v80, 0
    %v321 = vsel %vm120, %v81, 0
    %v324 = vsel %vm120, %v82, 0
    %v327 = vsel %vm120, %v83, 0
    %v330 = vsel %vm120, %v84, 0
    %v333 = vsel %vm120, %v85, 0
    %v336 = vsel %vm120, %v86, 0
    %v339 = vsel %vm120, %v87, 0
    %v342 = vsel %vm120, %v88, 0
    %v345 = vsel %vm120, %v89, 0
    %v348 = vsel %vm120, %v90, 0
    %v351 = vsel %vm120, %v91, 0
    %v354 = vsel %vm120, %v92, 0
    %v357 = vsel %vm120, %v93, 0
    %v360 = vsel %vm120, %v94, 0
    %362 = vmatprep.subr.mxu0 0.0
    %363 = vmatpush1.msra.mxu0 %v95
    %364 = vmatprep.subr.mxu0 0.0
    %365 = vmatpush1.msra.mxu0 %v96
    %366 = vmatprep.subr.mxu0 0.0
    %367 = vmatpush1.msra.mxu0 %v97
    %368 = vmatprep.subr.mxu0 0.0
    %369 = vmatpush1.msra.mxu0 %v98
    %370 = vmatprep.subr.mxu0 0.0
    %371 = vmatpush1.msra.mxu0 0.0
    %372 = vmatprep.subr.mxu0 0.0
    %373 = vmatpush1.msra.mxu0 0.0
    %374 = vmatprep.subr.mxu0 0.0
    %375 = vmatpush1.msra.mxu0 0.0
    %376 = vmatprep.subr.mxu0 0.0
    %377 = vmatpush1.msra.mxu0 0.0
    %378 = vmatprep.subr.mxu0 0.0
    %379 = vmatpush1.msra.mxu0 0.0
    %380 = vmatprep.subr.mxu0 0.0
    %381 = vmatpush1.msra.mxu0 0.0
    %382 = vmatprep.subr.mxu0 0.0
    %383 = vmatpush1.msra.mxu0 0.0
    %384 = vmatprep.subr.mxu0 0.0
    %385 = vmatpush1.msra.mxu0 0.0
    %386 = vmatprep.subr.mxu0 0.0
    %387 = vmatpush1.msra.mxu0 0.0
    %388 = vmatprep.subr.mxu0 0.0
    %389 = vmatpush1.msra.mxu0 0.0
    %390 = vmatprep.subr.mxu0 0.0
    %391 = vmatpush1.msra.mxu0 0.0
    %392 = vmatprep.subr.mxu0 0.0
    %393 = vmatpush1.msra.mxu0 0.0
    %394 = vmatprep.subr.mxu0 0.0
    %395 = vmatpush1.msra.mxu0 0.0
    %396 = vmatprep.subr.mxu0 0.0
    %397 = vmatpush1.msra.mxu0 0.0
    %398 = vmatprep.subr.mxu0 0.0
    %399 = vmatpush1.msra.mxu0 0.0
    %400 = vmatprep.subr.mxu0 0.0
    %401 = vmatpush1.msra.mxu0 0.0
    %402 = vmatprep.subr.mxu0 0.0
    %403 = vmatpush1.msra.mxu0 0.0
    %404 = vmatprep.subr.mxu0 0.0
    %405 = vmatpush1.msra.mxu0 0.0
    %406 = vmatprep.subr.mxu0 0.0
    %407 = vmatpush1.msra.mxu0 0.0
    %408 = vmatprep.subr.mxu0 0.0
    %409 = vmatpush1.msra.mxu0 0.0
    %410 = vmatprep.subr.mxu0 0.0
    %411 = vmatpush1.msra.mxu0 0.0
    %412 = vmatprep.subr.mxu0 0.0
    %413 = vmatpush1.msra.mxu0 0.0
    %414 = vmatprep.subr.mxu0 0.0
    %415 = vmatpush1.msra.mxu0 0.0
    %416 = vmatprep.subr.mxu0 0.0
    %417 = vmatpush1.msra.mxu0 0.0
    %418 = vmatprep.subr.mxu0 0.0
    %419 = vmatpush1.msra.mxu0 0.0
    %420 = vmatprep.subr.mxu0 0.0
    %421 = vmatpush1.msra.mxu0 0.0
    %422 = vmatprep.subr.mxu0 0.0
    %423 = vmatpush1.msra.mxu0 0.0
    %424 = vmatprep.subr.mxu0 0.0
    %425 = vmatpush1.msra.mxu0 0.0
    %426 = vmatprep.mubr.f32.mxu0 0.0
    %427 = vmatmul.mubr.f32.gmra.mrb[0].mxu0 %v315
    %v428 = vpop.f32.mrb[0].mxu0
    %v429 = vadd.f32 %v236, %v428
    %v430 = vpop.f32.mrb[0].mxu0
    %431 = vmatprep.mubr.f32.mxu0 0.0
    %432 = vmatmul.mubr.f32.gmra.mrb[0].mxu0 %v318
    %v433 = vpop.f32.mrb[0].mxu0
    %v434 = vadd.f32 %v241, %v433
    %v435 = vpop.f32.mrb[0].mxu0
    %436 = vmatprep.mubr.f32.mxu0 0.0
    %437 = vmatmul.mubr.f32.gmra.mrb[0].mxu0 %v321
    %v438 = vpop.f32.mrb[0].mxu0
    %v439 = vadd.f32 %v246, %v438
    %v440 = vpop.f32.mrb[0].mxu0
    %441 = vmatprep.mubr.f32.mxu0 0.0
    %442 = vmatmul.mubr.f32.gmra.mrb[0].mxu0 %v324
    %v443 = vpop.f32.mrb[0].mxu0
    %v444 = vadd.f32 %v251, %v443
    %v445 = vpop.f32.mrb[0].mxu0
    %446 = vmatprep.mubr.f32.mxu0 0.0
    %447 = vmatmul.mubr.f32.gmra.mrb[0].mxu0 %v327
    %v448 = vpop.f32.mrb[0].mxu0
    %v449 = vadd.f32 %v256, %v448
    %v450 = vpop.f32.mrb[0].mxu0
    %451 = vmatprep.mubr.f32.mxu0 0.0
    %452 = vmatmul.mubr.f32.gmra.mrb[0].mxu0 %v330
    %v453 = vpop.f32.mrb[0].mxu0
    %v454 = vadd.f32 %v261, %v453
    %v455 = vpop.f32.mrb[0].mxu0
    %456 = vmatprep.mubr.f32.mxu0 0.0
    %457 = vmatmul.mubr.f32.gmra.mrb[0].mxu0 %v333
    %v458 = vpop.f32.mrb[0].mxu0
    %v459 = vadd.f32 %v266, %v458
    %v460 = vpop.f32.mrb[0].mxu0
    %461 = vmatprep.mubr.f32.mxu0 0.0
    %462 = vmatmul.mubr.f32.gmra.mrb[0].mxu0 %v336
    %v463 = vpop.f32.mrb[0].mxu0
    %v464 = vadd.f32 %v271, %v463
    %v465 = vpop.f32.mrb[0].mxu0
    %466 = vmatprep.mubr.f32.mxu0 0.0
    %467 = vmatmul.mubr.f32.gmra.mrb[0].mxu0 %v339
    %v468 = vpop.f32.mrb[0].mxu0
    %v469 = vadd.f32 %v276, %v468
    %v470 = vpop.f32.mrb[0].mxu0
    %471 = vmatprep.mubr.f32.mxu0 0.0
    %472 = vmatmul.mubr.f32.gmra.mrb[0].mxu0 %v342
    %v473 = vpop.f32.mrb[0].mxu0
    %v474 = vadd.f32 %v281, %v473
    %v475 = vpop.f32.mrb[0].mxu0
    %476 = vmatprep.mubr.f32.mxu0 0.0
    %477 = vmatmul.mubr.f32.gmra.mrb[0].mxu0 %v345
    %v478 = vpop.f32.mrb[0].mxu0
    %v479 = vadd.f32 %v286, %v478
    %v480 = vpop.f32.mrb[0].mxu0
    %481 = vmatprep.mubr.f32.mxu0 0.0
    %482 = vmatmul.mubr.f32.gmra.mrb[0].mxu0 %v348
    %v483 = vpop.f32.mrb[0].mxu0
    %v484 = vadd.f32 %v291, %v483
    %v485 = vpop.f32.mrb[0].mxu0
    %486 = vmatprep.mubr.f32.mxu0 0.0
    %487 = vmatmul.mubr.f32.gmra.mrb[0].mxu0 %v351
    %v488 = vpop.f32.mrb[0].mxu0
    %v489 = vadd.f32 %v296, %v488
    %v490 = vpop.f32.mrb[0].mxu0
    %491 = vmatprep.mubr.f32.mxu0 0.0
    %492 = vmatmul.mubr.f32.gmra.mrb[0].mxu0 %v354
    %v493 = vpop.f32.mrb[0].mxu0
    %v494 = vadd.f32 %v301, %v493
    %v495 = vpop.f32.mrb[0].mxu0
    %496 = vmatprep.mubr.f32.mxu0 0.0
    %497 = vmatmul.mubr.f32.gmra.mrb[0].mxu0 %v357
    %v498 = vpop.f32.mrb[0].mxu0
    %v499 = vadd.f32 %v306, %v498
    %v500 = vpop.f32.mrb[0].mxu0
    %501 = vmatprep.mubr.f32.mxu0 0.0
    %502 = vmatmul.mubr.f32.gmra.mrb[0].mxu0 %v360
    %v503 = vpop.f32.mrb[0].mxu0
    %v504 = vadd.f32 %v311, %v503
    %v505 = vpop.f32.mrb[0].mxu0
    %506 = vdwg.mxu0
    %v507 = vld [vmem:[#allocation2 + $0x2] sm:$0xff]
    %v508 = vld [vmem:[#allocation2 + $0xa] sm:$0xff]
    %v509 = vld [vmem:[#allocation2 + $0x1a] sm:$0xff]
    %v510 = vld [vmem:[#allocation2 + $0x22] sm:$0xff]
    %v511 = vld [vmem:[#allocation2 + $0x32] sm:$0xff]
    %v512 = vld [vmem:[#allocation2 + $0x3a] sm:$0xff]
    %v513 = vld [vmem:[#allocation2 + $0x4a] sm:$0xff]
    %v514 = vld [vmem:[#allocation2 + $0x52] sm:$0xff]
    %v515 = vld [vmem:[#allocation2 + $0x62] sm:$0xff]
    %v516 = vld [vmem:[#allocation2 + $0x6a] sm:$0xff]
    %v517 = vld [vmem:[#allocation2 + $0x7a] sm:$0xff]
    %v518 = vld [vmem:[#allocation2 + $0x82] sm:$0xff]
    %v519 = vld [vmem:[#allocation2 + $0x92] sm:$0xff]
    %v520 = vld [vmem:[#allocation2 + $0x9a] sm:$0xff]
    %v521 = vld [vmem:[#allocation2 + $0xaa] sm:$0xff]
    %v522 = vld [vmem:[#allocation2 + $0xb2] sm:$0xff]
    %s523 = scalar_lea.vmem [#allocation5], 64
    %v524 = vld [vmem:[%s523] sm:$0xff]
    %v525 = vld [vmem:[%s523 + $0x8] sm:$0xff]
    %v526 = vld [vmem:[%s523 + $0x10] sm:$0xff]
    %v527 = vld [vmem:[%s523 + $0x18] sm:$0xff]
    %v529 = vsel %vm120, %v507, 0
    %v532 = vsel %vm120, %v508, 0
    %v535 = vsel %vm120, %v509, 0
    %v538 = vsel %vm120, %v510, 0
    %v541 = vsel %vm120, %v511, 0
    %v544 = vsel %vm120, %v512, 0
    %v547 = vsel %vm120, %v513, 0
    %v550 = vsel %vm120, %v514, 0
    %v553 = vsel %vm120, %v515, 0
    %v556 = vsel %vm120, %v516, 0
    %v559 = vsel %vm120, %v517, 0
    %v562 = vsel %vm120, %v518, 0
    %v565 = vsel %vm120, %v519, 0
    %v568 = vsel %vm120, %v520, 0
    %v571 = vsel %vm120, %v521, 0
    %v574 = vsel %vm120, %v522, 0
    %576 = vmatprep.subr.mxu0 0.0
    %577 = vmatpush1.msra.mxu0 %v524
    %578 = vmatprep.subr.mxu0 0.0
    %579 = vmatpush1.msra.mxu0 %v525
    %580 = vmatprep.subr.mxu0 0.0
    %581 = vmatpush1.msra.mxu0 %v526
    %582 = vmatprep.subr.mxu0 0.0
    %583 = vmatpush1.msra.mxu0 %v527
    %584 = vmatprep.subr.mxu0 0.0
    %585 = vmatpush1.msra.mxu0 0.0
    %586 = vmatprep.subr.mxu0 0.0
    %587 = vmatpush1.msra.mxu0 0.0
    %588 = vmatprep.subr.mxu0 0.0
    %589 = vmatpush1.msra.mxu0 0.0
    %590 = vmatprep.subr.mxu0 0.0
    %591 = vmatpush1.msra.mxu0 0.0
    %592 = vmatprep.subr.mxu0 0.0
    %593 = vmatpush1.msra.mxu0 0.0
    %594 = vmatprep.subr.mxu0 0.0
    %595 = vmatpush1.msra.mxu0 0.0
    %596 = vmatprep.subr.mxu0 0.0
    %597 = vmatpush1.msra.mxu0 0.0
    %598 = vmatprep.subr.mxu0 0.0
    %599 = vmatpush1.msra.mxu0 0.0
    %600 = vmatprep.subr.mxu0 0.0
    %601 = vmatpush1.msra.mxu0 0.0
    %602 = vmatprep.subr.mxu0 0.0
    %603 = vmatpush1.msra.mxu0 0.0
    %604 = vmatprep.subr.mxu0 0.0
    %605 = vmatpush1.msra.mxu0 0.0
    %606 = vmatprep.subr.mxu0 0.0
    %607 = vmatpush1.msra.mxu0 0.0
    %608 = vmatprep.subr.mxu0 0.0
    %609 = vmatpush1.msra.mxu0 0.0
    %610 = vmatprep.subr.mxu0 0.0
    %611 = vmatpush1.msra.mxu0 0.0
    %612 = vmatprep.subr.mxu0 0.0
    %613 = vmatpush1.msra.mxu0 0.0
    %614 = vmatprep.subr.mxu0 0.0
    %615 = vmatpush1.msra.mxu0 0.0
    %616 = vmatprep.subr.mxu0 0.0
    %617 = vmatpush1.msra.mxu0 0.0
    %618 = vmatprep.subr.mxu0 0.0
    %619 = vmatpush1.msra.mxu0 0.0
    %620 = vmatprep.subr.mxu0 0.0
    %621 = vmatpush1.msra.mxu0 0.0
    %622 = vmatprep.subr.mxu0 0.0
    %623 = vmatpush1.msra.mxu0 0.0
    %624 = vmatprep.subr.mxu0 0.0
    %625 = vmatpush1.msra.mxu0 0.0
    %626 = vmatprep.subr.mxu0 0.0
    %627 = vmatpush1.msra.mxu0 0.0
    %628 = vmatprep.subr.mxu0 0.0
    %629 = vmatpush1.msra.mxu0 0.0
    %630 = vmatprep.subr.mxu0 0.0
    %631 = vmatpush1.msra.mxu0 0.0
    %632 = vmatprep.subr.mxu0 0.0
    %633 = vmatpush1.msra.mxu0 0.0
    %634 = vmatprep.subr.mxu0 0.0
    %635 = vmatpush1.msra.mxu0 0.0
    %636 = vmatprep.subr.mxu0 0.0
    %637 = vmatpush1.msra.mxu0 0.0
    %638 = vmatprep.subr.mxu0 0.0
    %639 = vmatpush1.msra.mxu0 0.0
    %640 = vmatprep.mubr.f32.mxu0 0.0
    %641 = vmatmul.mubr.f32.gmra.mrb[0].mxu0 %v529
    %v642 = vpop.f32.mrb[0].mxu0
    %v643 = vadd.f32 0.0, %v642
    %v644 = vpop.f32.mrb[0].mxu0
    %645 = vmatprep.mubr.f32.mxu0 0.0
    %646 = vmatmul.mubr.f32.gmra.mrb[0].mxu0 %v532
    %v647 = vpop.f32.mrb[0].mxu0
    %v648 = vadd.f32 0.0, %v647
    %v649 = vpop.f32.mrb[0].mxu0
    %650 = vmatprep.mubr.f32.mxu0 0.0
    %651 = vmatmul.mubr.f32.gmra.mrb[0].mxu0 %v535
    %v652 = vpop.f32.mrb[0].mxu0
    %v653 = vadd.f32 0.0, %v652
    %v654 = vpop.f32.mrb[0].mxu0
    %655 = vmatprep.mubr.f32.mxu0 0.0
    %656 = vmatmul.mubr.f32.gmra.mrb[0].mxu0 %v538
    %v657 = vpop.f32.mrb[0].mxu0
    %v658 = vadd.f32 0.0, %v657
    %v659 = vpop.f32.mrb[0].mxu0
    %660 = vmatprep.mubr.f32.mxu0 0.0
    %661 = vmatmul.mubr.f32.gmra.mrb[0].mxu0 %v541
    %v662 = vpop.f32.mrb[0].mxu0
    %v663 = vadd.f32 0.0, %v662
    %v664 = vpop.f32.mrb[0].mxu0
    %665 = vmatprep.mubr.f32.mxu0 0.0
    %666 = vmatmul.mubr.f32.gmra.mrb[0].mxu0 %v544
    %v667 = vpop.f32.mrb[0].mxu0
    %v668 = vadd.f32 0.0, %v667
    %v669 = vpop.f32.mrb[0].mxu0
    %670 = vmatprep.mubr.f32.mxu0 0.0
    %671 = vmatmul.mubr.f32.gmra.mrb[0].mxu0 %v547
    %v672 = vpop.f32.mrb[0].mxu0
    %v673 = vadd.f32 0.0, %v672
    %v674 = vpop.f32.mrb[0].mxu0
    %675 = vmatprep.mubr.f32.mxu0 0.0
    %676 = vmatmul.mubr.f32.gmra.mrb[0].mxu0 %v550
    %v677 = vpop.f32.mrb[0].mxu0
    %v678 = vadd.f32 0.0, %v677
    %v679 = vpop.f32.mrb[0].mxu0
    %680 = vmatprep.mubr.f32.mxu0 0.0
    %681 = vmatmul.mubr.f32.gmra.mrb[0].mxu0 %v553
    %v682 = vpop.f32.mrb[0].mxu0
    %v683 = vadd.f32 0.0, %v682
    %v684 = vpop.f32.mrb[0].mxu0
    %685 = vmatprep.mubr.f32.mxu0 0.0
    %686 = vmatmul.mubr.f32.gmra.mrb[0].mxu0 %v556
    %v687 = vpop.f32.mrb[0].mxu0
    %v688 = vadd.f32 0.0, %v687
    %v689 = vpop.f32.mrb[0].mxu0
    %690 = vmatprep.mubr.f32.mxu0 0.0
    %691 = vmatmul.mubr.f32.gmra.mrb[0].mxu0 %v559
    %v692 = vpop.f32.mrb[0].mxu0
    %v693 = vadd.f32 0.0, %v692
    %v694 = vpop.f32.mrb[0].mxu0
    %695 = vmatprep.mubr.f32.mxu0 0.0
    %696 = vmatmul.mubr.f32.gmra.mrb[0].mxu0 %v562
    %v697 = vpop.f32.mrb[0].mxu0
    %v698 = vadd.f32 0.0, %v697
    %v699 = vpop.f32.mrb[0].mxu0
    %700 = vmatprep.mubr.f32.mxu0 0.0
    %701 = vmatmul.mubr.f32.gmra.mrb[0].mxu0 %v565
    %v702 = vpop.f32.mrb[0].mxu0
    %v703 = vadd.f32 0.0, %v702
    %v704 = vpop.f32.mrb[0].mxu0
    %705 = vmatprep.mubr.f32.mxu0 0.0
    %706 = vmatmul.mubr.f32.gmra.mrb[0].mxu0 %v568
    %v707 = vpop.f32.mrb[0].mxu0
    %v708 = vadd.f32 0.0, %v707
    %v709 = vpop.f32.mrb[0].mxu0
    %710 = vmatprep.mubr.f32.mxu0 0.0
    %711 = vmatmul.mubr.f32.gmra.mrb[0].mxu0 %v571
    %v712 = vpop.f32.mrb[0].mxu0
    %v713 = vadd.f32 0.0, %v712
    %v714 = vpop.f32.mrb[0].mxu0
    %715 = vmatprep.mubr.f32.mxu0 0.0
    %716 = vmatmul.mubr.f32.gmra.mrb[0].mxu0 %v574
    %v717 = vpop.f32.mrb[0].mxu0
    %v718 = vadd.f32 0.0, %v717
    %v719 = vpop.f32.mrb[0].mxu0
    %720 = vdwg.mxu0
    %v721 = vadd.f32 %v429, %v643
    %v722 = vadd.f32 %v434, %v648
    %v723 = vadd.f32 %v439, %v653
    %v724 = vadd.f32 %v444, %v658
    %v725 = vadd.f32 %v449, %v663
    %v726 = vadd.f32 %v454, %v668
    %v727 = vadd.f32 %v459, %v673
    %v728 = vadd.f32 %v464, %v678
    %v729 = vadd.f32 %v469, %v683
    %v730 = vadd.f32 %v474, %v688
    %v731 = vadd.f32 %v479, %v693
    %v732 = vadd.f32 %v484, %v698
    %v733 = vadd.f32 %v489, %v703
    %v734 = vadd.f32 %v494, %v708
    %v735 = vadd.f32 %v499, %v713
    %v736 = vadd.f32 %v504, %v718
    %v737 = vld [vmem:[#allocation2 + $0x3] sm:$0xff]
    %v738 = vld [vmem:[#allocation2 + $0xb] sm:$0xff]
    %v739 = vld [vmem:[#allocation2 + $0x1b] sm:$0xff]
    %v740 = vld [vmem:[#allocation2 + $0x23] sm:$0xff]
    %v741 = vld [vmem:[#allocation2 + $0x33] sm:$0xff]
    %v742 = vld [vmem:[#allocation2 + $0x3b] sm:$0xff]
    %v743 = vld [vmem:[#allocation2 + $0x4b] sm:$0xff]
    %v744 = vld [vmem:[#allocation2 + $0x53] sm:$0xff]
    %v745 = vld [vmem:[#allocation2 + $0x63] sm:$0xff]
    %v746 = vld [vmem:[#allocation2 + $0x6b] sm:$0xff]
    %v747 = vld [vmem:[#allocation2 + $0x7b] sm:$0xff]
    %v748 = vld [vmem:[#allocation2 + $0x83] sm:$0xff]
    %v749 = vld [vmem:[#allocation2 + $0x93] sm:$0xff]
    %v750 = vld [vmem:[#allocation2 + $0x9b] sm:$0xff]
    %v751 = vld [vmem:[#allocation2 + $0xab] sm:$0xff]
    %v752 = vld [vmem:[#allocation2 + $0xb3] sm:$0xff]
    %s753 = scalar_lea.vmem [#allocation5], 96
    %v754 = vld [vmem:[%s753] sm:$0xff]
    %v755 = vld [vmem:[%s753 + $0x8] sm:$0xff]
    %v756 = vld [vmem:[%s753 + $0x10] sm:$0xff]
    %v757 = vld [vmem:[%s753 + $0x18] sm:$0xff]
    %v759 = vsel %vm120, %v737, 0
    %v762 = vsel %vm120, %v738, 0
    %v765 = vsel %vm120, %v739, 0
    %v768 = vsel %vm120, %v740, 0
    %v771 = vsel %vm120, %v741, 0
    %v774 = vsel %vm120, %v742, 0
    %v777 = vsel %vm120, %v743, 0
    %v780 = vsel %vm120, %v744, 0
    %v783 = vsel %vm120, %v745, 0
    %v786 = vsel %vm120, %v746, 0
    %v789 = vsel %vm120, %v747, 0
    %v792 = vsel %vm120, %v748, 0
    %v795 = vsel %vm120, %v749, 0
    %v798 = vsel %vm120, %v750, 0
    %v801 = vsel %vm120, %v751, 0
    %v804 = vsel %vm120, %v752, 0
    %806 = vmatprep.subr.mxu0 0.0
    %807 = vmatpush1.msra.mxu0 %v754
    %808 = vmatprep.subr.mxu0 0.0
    %809 = vmatpush1.msra.mxu0 %v755
    %810 = vmatprep.subr.mxu0 0.0
    %811 = vmatpush1.msra.mxu0 %v756
    %812 = vmatprep.subr.mxu0 0.0
    %813 = vmatpush1.msra.mxu0 %v757
    %814 = vmatprep.subr.mxu0 0.0
    %815 = vmatpush1.msra.mxu0 0.0
    %816 = vmatprep.subr.mxu0 0.0
    %817 = vmatpush1.msra.mxu0 0.0
    %818 = vmatprep.subr.mxu0 0.0
    %819 = vmatpush1.msra.mxu0 0.0
    %820 = vmatprep.subr.mxu0 0.0
    %821 = vmatpush1.msra.mxu0 0.0
    %822 = vmatprep.subr.mxu0 0.0
    %823 = vmatpush1.msra.mxu0 0.0
    %824 = vmatprep.subr.mxu0 0.0
    %825 = vmatpush1.msra.mxu0 0.0
    %826 = vmatprep.subr.mxu0 0.0
    %827 = vmatpush1.msra.mxu0 0.0
    %828 = vmatprep.subr.mxu0 0.0
    %829 = vmatpush1.msra.mxu0 0.0
    %830 = vmatprep.subr.mxu0 0.0
    %831 = vmatpush1.msra.mxu0 0.0
    %832 = vmatprep.subr.mxu0 0.0
    %833 = vmatpush1.msra.mxu0 0.0
    %834 = vmatprep.subr.mxu0 0.0
    %835 = vmatpush1.msra.mxu0 0.0
    %836 = vmatprep.subr.mxu0 0.0
    %837 = vmatpush1.msra.mxu0 0.0
    %838 = vmatprep.subr.mxu0 0.0
    %839 = vmatpush1.msra.mxu0 0.0
    %840 = vmatprep.subr.mxu0 0.0
    %841 = vmatpush1.msra.mxu0 0.0
    %842 = vmatprep.subr.mxu0 0.0
    %843 = vmatpush1.msra.mxu0 0.0
    %844 = vmatprep.subr.mxu0 0.0
    %845 = vmatpush1.msra.mxu0 0.0
    %846 = vmatprep.subr.mxu0 0.0
    %847 = vmatpush1.msra.mxu0 0.0
    %848 = vmatprep.subr.mxu0 0.0
    %849 = vmatpush1.msra.mxu0 0.0
    %850 = vmatprep.subr.mxu0 0.0
    %851 = vmatpush1.msra.mxu0 0.0
    %852 = vmatprep.subr.mxu0 0.0
    %853 = vmatpush1.msra.mxu0 0.0
    %854 = vmatprep.subr.mxu0 0.0
    %855 = vmatpush1.msra.mxu0 0.0
    %856 = vmatprep.subr.mxu0 0.0
    %857 = vmatpush1.msra.mxu0 0.0
    %858 = vmatprep.subr.mxu0 0.0
    %859 = vmatpush1.msra.mxu0 0.0
    %860 = vmatprep.subr.mxu0 0.0
    %861 = vmatpush1.msra.mxu0 0.0
    %862 = vmatprep.subr.mxu0 0.0
    %863 = vmatpush1.msra.mxu0 0.0
    %864 = vmatprep.subr.mxu0 0.0
    %865 = vmatpush1.msra.mxu0 0.0
    %866 = vmatprep.subr.mxu0 0.0
    %867 = vmatpush1.msra.mxu0 0.0
    %868 = vmatprep.subr.mxu0 0.0
    %869 = vmatpush1.msra.mxu0 0.0
    %870 = vmatprep.mubr.f32.mxu0 0.0
    %871 = vmatmul.mubr.f32.gmra.mrb[0].mxu0 %v759
    %v872 = vpop.f32.mrb[0].mxu0
    %v873 = vadd.f32 0.0, %v872
    %v874 = vpop.f32.mrb[0].mxu0
    %875 = vmatprep.mubr.f32.mxu0 0.0
    %876 = vmatmul.mubr.f32.gmra.mrb[0].mxu0 %v762
    %v877 = vpop.f32.mrb[0].mxu0
    %v878 = vadd.f32 0.0, %v877
    %v879 = vpop.f32.mrb[0].mxu0
    %880 = vmatprep.mubr.f32.mxu0 0.0
    %881 = vmatmul.mubr.f32.gmra.mrb[0].mxu0 %v765
    %v882 = vpop.f32.mrb[0].mxu0
    %v883 = vadd.f32 0.0, %v882
    %v884 = vpop.f32.mrb[0].mxu0
    %885 = vmatprep.mubr.f32.mxu0 0.0
    %886 = vmatmul.mubr.f32.gmra.mrb[0].mxu0 %v768
    %v887 = vpop.f32.mrb[0].mxu0
    %v888 = vadd.f32 0.0, %v887
    %v889 = vpop.f32.mrb[0].mxu0
    %890 = vmatprep.mubr.f32.mxu0 0.0
    %891 = vmatmul.mubr.f32.gmra.mrb[0].mxu0 %v771
    %v892 = vpop.f32.mrb[0].mxu0
    %v893 = vadd.f32 0.0, %v892
    %v894 = vpop.f32.mrb[0].mxu0
    %895 = vmatprep.mubr.f32.mxu0 0.0
    %896 = vmatmul.mubr.f32.gmra.mrb[0].mxu0 %v774
    %v897 = vpop.f32.mrb[0].mxu0
    %v898 = vadd.f32 0.0, %v897
    %v899 = vpop.f32.mrb[0].mxu0
    %900 = vmatprep.mubr.f32.mxu0 0.0
    %901 = vmatmul.mubr.f32.gmra.mrb[0].mxu0 %v777
    %v902 = vpop.f32.mrb[0].mxu0
    %v903 = vadd.f32 0.0, %v902
    %v904 = vpop.f32.mrb[0].mxu0
    %905 = vmatprep.mubr.f32.mxu0 0.0
    %906 = vmatmul.mubr.f32.gmra.mrb[0].mxu0 %v780
    %v907 = vpop.f32.mrb[0].mxu0
    %v908 = vadd.f32 0.0, %v907
    %v909 = vpop.f32.mrb[0].mxu0
    %910 = vmatprep.mubr.f32.mxu0 0.0
    %911 = vmatmul.mubr.f32.gmra.mrb[0].mxu0 %v783
    %v912 = vpop.f32.mrb[0].mxu0
    %v913 = vadd.f32 0.0, %v912
    %v914 = vpop.f32.mrb[0].mxu0
    %915 = vmatprep.mubr.f32.mxu0 0.0
    %916 = vmatmul.mubr.f32.gmra.mrb[0].mxu0 %v786
    %v917 = vpop.f32.mrb[0].mxu0
    %v918 = vadd.f32 0.0, %v917
    %v919 = vpop.f32.mrb[0].mxu0
    %920 = vmatprep.mubr.f32.mxu0 0.0
    %921 = vmatmul.mubr.f32.gmra.mrb[0].mxu0 %v789
    %v922 = vpop.f32.mrb[0].mxu0
    %v923 = vadd.f32 0.0, %v922
    %v924 = vpop.f32.mrb[0].mxu0
    %925 = vmatprep.mubr.f32.mxu0 0.0
    %926 = vmatmul.mubr.f32.gmra.mrb[0].mxu0 %v792
    %v927 = vpop.f32.mrb[0].mxu0
    %v928 = vadd.f32 0.0, %v927
    %v929 = vpop.f32.mrb[0].mxu0
    %930 = vmatprep.mubr.f32.mxu0 0.0
    %931 = vmatmul.mubr.f32.gmra.mrb[0].mxu0 %v795
    %v932 = vpop.f32.mrb[0].mxu0
    %v933 = vadd.f32 0.0, %v932
    %v934 = vpop.f32.mrb[0].mxu0
    %935 = vmatprep.mubr.f32.mxu0 0.0
    %936 = vmatmul.mubr.f32.gmra.mrb[0].mxu0 %v798
    %v937 = vpop.f32.mrb[0].mxu0
    %v938 = vadd.f32 0.0, %v937
    %v939 = vpop.f32.mrb[0].mxu0
    %940 = vmatprep.mubr.f32.mxu0 0.0
    %941 = vmatmul.mubr.f32.gmra.mrb[0].mxu0 %v801
    %v942 = vpop.f32.mrb[0].mxu0
    %v943 = vadd.f32 0.0, %v942
    %v944 = vpop.f32.mrb[0].mxu0
    %945 = vmatprep.mubr.f32.mxu0 0.0
    %946 = vmatmul.mubr.f32.gmra.mrb[0].mxu0 %v804
    %v947 = vpop.f32.mrb[0].mxu0
    %v948 = vadd.f32 0.0, %v947
    %v949 = vpop.f32.mrb[0].mxu0
    %950 = vdwg.mxu0
    %v951 = vadd.f32 %v721, %v873
    %v952 = vadd.f32 %v722, %v878
    %v953 = vadd.f32 %v723, %v883
    %v954 = vadd.f32 %v724, %v888
    %v955 = vadd.f32 %v725, %v893
    %v956 = vadd.f32 %v726, %v898
    %v957 = vadd.f32 %v727, %v903
    %v958 = vadd.f32 %v728, %v908
    %v959 = vadd.f32 %v729, %v913
    %v960 = vadd.f32 %v730, %v918
    %v961 = vadd.f32 %v731, %v923
    %v962 = vadd.f32 %v732, %v928
    %v963 = vadd.f32 %v733, %v933
    %v964 = vadd.f32 %v734, %v938
    %v965 = vadd.f32 %v735, %v943
    %v966 = vadd.f32 %v736, %v948
    %v967 = vld [vmem:[#allocation2 + $0x4] sm:$0xff]
    %v968 = vld [vmem:[#allocation2 + $0xc] sm:$0xff]
    %v969 = vld [vmem:[#allocation2 + $0x1c] sm:$0xff]
    %v970 = vld [vmem:[#allocation2 + $0x24] sm:$0xff]
    %v971 = vld [vmem:[#allocation2 + $0x34] sm:$0xff]
    %v972 = vld [vmem:[#allocation2 + $0x3c] sm:$0xff]
    %v973 = vld [vmem:[#allocation2 + $0x4c] sm:$0xff]
    %v974 = vld [vmem:[#allocation2 + $0x54] sm:$0xff]
    %v975 = vld [vmem:[#allocation2 + $0x64] sm:$0xff]
    %v976 = vld [vmem:[#allocation2 + $0x6c] sm:$0xff]
    %v977 = vld [vmem:[#allocation2 + $0x7c] sm:$0xff]
    %v978 = vld [vmem:[#allocation2 + $0x84] sm:$0xff]
    %v979 = vld [vmem:[#allocation2 + $0x94] sm:$0xff]
    %v980 = vld [vmem:[#allocation2 + $0x9c] sm:$0xff]
    %v981 = vld [vmem:[#allocation2 + $0xac] sm:$0xff]
    %v982 = vld [vmem:[#allocation2 + $0xb4] sm:$0xff]
    %s983 = scalar_lea.vmem [#allocation5], 128
    %v984 = vld [vmem:[%s983] sm:$0xff]
    %v985 = vld [vmem:[%s983 + $0x8] sm:$0xff]
    %v986 = vld [vmem:[%s983 + $0x10] sm:$0xff]
    %v987 = vld [vmem:[%s983 + $0x18] sm:$0xff]
    %v989 = vsel %vm120, %v967, 0
    %v992 = vsel %vm120, %v968, 0
    %v995 = vsel %vm120, %v969, 0
    %v998 = vsel %vm120, %v970, 0
    %v1001 = vsel %vm120, %v971, 0
    %v1004 = vsel %vm120, %v972, 0
    %v1007 = vsel %vm120, %v973, 0
    %v1010 = vsel %vm120, %v974, 0
    %v1013 = vsel %vm120, %v975, 0
    %v1016 = vsel %vm120, %v976, 0
    %v1019 = vsel %vm120, %v977, 0
    %v1022 = vsel %vm120, %v978, 0
    %v1025 = vsel %vm120, %v979, 0
    %v1028 = vsel %vm120, %v980, 0
    %v1031 = vsel %vm120, %v981, 0
    %v1034 = vsel %vm120, %v982, 0
    %1036 = vmatprep.subr.mxu0 0.0
    %1037 = vmatpush1.msra.mxu0 %v984
    %1038 = vmatprep.subr.mxu0 0.0
    %1039 = vmatpush1.msra.mxu0 %v985
    %1040 = vmatprep.subr.mxu0 0.0
    %1041 = vmatpush1.msra.mxu0 %v986
    %1042 = vmatprep.subr.mxu0 0.0
    %1043 = vmatpush1.msra.mxu0 %v987
    %1044 = vmatprep.subr.mxu0 0.0
    %1045 = vmatpush1.msra.mxu0 0.0
    %1046 = vmatprep.subr.mxu0 0.0
    %1047 = vmatpush1.msra.mxu0 0.0
    %1048 = vmatprep.subr.mxu0 0.0
    %1049 = vmatpush1.msra.mxu0 0.0
    %1050 = vmatprep.subr.mxu0 0.0
    %1051 = vmatpush1.msra.mxu0 0.0
    %1052 = vmatprep.subr.mxu0 0.0
    %1053 = vmatpush1.msra.mxu0 0.0
    %1054 = vmatprep.subr.mxu0 0.0
    %1055 = vmatpush1.msra.mxu0 0.0
    %1056 = vmatprep.subr.mxu0 0.0
    %1057 = vmatpush1.msra.mxu0 0.0
    %1058 = vmatprep.subr.mxu0 0.0
    %1059 = vmatpush1.msra.mxu0 0.0
    %1060 = vmatprep.subr.mxu0 0.0
    %1061 = vmatpush1.msra.mxu0 0.0
    %1062 = vmatprep.subr.mxu0 0.0
    %1063 = vmatpush1.msra.mxu0 0.0
    %1064 = vmatprep.subr.mxu0 0.0
    %1065 = vmatpush1.msra.mxu0 0.0
    %1066 = vmatprep.subr.mxu0 0.0
    %1067 = vmatpush1.msra.mxu0 0.0
    %1068 = vmatprep.subr.mxu0 0.0
    %1069 = vmatpush1.msra.mxu0 0.0
    %1070 = vmatprep.subr.mxu0 0.0
    %1071 = vmatpush1.msra.mxu0 0.0
    %1072 = vmatprep.subr.mxu0 0.0
    %1073 = vmatpush1.msra.mxu0 0.0
    %1074 = vmatprep.subr.mxu0 0.0
    %1075 = vmatpush1.msra.mxu0 0.0
    %1076 = vmatprep.subr.mxu0 0.0
    %1077 = vmatpush1.msra.mxu0 0.0
    %1078 = vmatprep.subr.mxu0 0.0
    %1079 = vmatpush1.msra.mxu0 0.0
    %1080 = vmatprep.subr.mxu0 0.0
    %1081 = vmatpush1.msra.mxu0 0.0
    %1082 = vmatprep.subr.mxu0 0.0
    %1083 = vmatpush1.msra.mxu0 0.0
    %1084 = vmatprep.subr.mxu0 0.0
    %1085 = vmatpush1.msra.mxu0 0.0
    %1086 = vmatprep.subr.mxu0 0.0
    %1087 = vmatpush1.msra.mxu0 0.0
    %1088 = vmatprep.subr.mxu0 0.0
    %1089 = vmatpush1.msra.mxu0 0.0
    %1090 = vmatprep.subr.mxu0 0.0
    %1091 = vmatpush1.msra.mxu0 0.0
    %1092 = vmatprep.subr.mxu0 0.0
    %1093 = vmatpush1.msra.mxu0 0.0
    %1094 = vmatprep.subr.mxu0 0.0
    %1095 = vmatpush1.msra.mxu0 0.0
    %1096 = vmatprep.subr.mxu0 0.0
    %1097 = vmatpush1.msra.mxu0 0.0
    %1098 = vmatprep.subr.mxu0 0.0
    %1099 = vmatpush1.msra.mxu0 0.0
    %1100 = vmatprep.mubr.f32.mxu0 0.0
    %1101 = vmatmul.mubr.f32.gmra.mrb[0].mxu0 %v989
    %v1102 = vpop.f32.mrb[0].mxu0
    %v1103 = vadd.f32 0.0, %v1102
    %v1104 = vpop.f32.mrb[0].mxu0
    %1105 = vmatprep.mubr.f32.mxu0 0.0
    %1106 = vmatmul.mubr.f32.gmra.mrb[0].mxu0 %v992
    %v1107 = vpop.f32.mrb[0].mxu0
    %v1108 = vadd.f32 0.0, %v1107
    %v1109 = vpop.f32.mrb[0].mxu0
    %1110 = vmatprep.mubr.f32.mxu0 0.0
    %1111 = vmatmul.mubr.f32.gmra.mrb[0].mxu0 %v995
    %v1112 = vpop.f32.mrb[0].mxu0
    %v1113 = vadd.f32 0.0, %v1112
    %v1114 = vpop.f32.mrb[0].mxu0
    %1115 = vmatprep.mubr.f32.mxu0 0.0
    %1116 = vmatmul.mubr.f32.gmra.mrb[0].mxu0 %v998
    %v1117 = vpop.f32.mrb[0].mxu0
    %v1118 = vadd.f32 0.0, %v1117
    %v1119 = vpop.f32.mrb[0].mxu0
    %1120 = vmatprep.mubr.f32.mxu0 0.0
    %1121 = vmatmul.mubr.f32.gmra.mrb[0].mxu0 %v1001
    %v1122 = vpop.f32.mrb[0].mxu0
    %v1123 = vadd.f32 0.0, %v1122
    %v1124 = vpop.f32.mrb[0].mxu0
    %1125 = vmatprep.mubr.f32.mxu0 0.0
    %1126 = vmatmul.mubr.f32.gmra.mrb[0].mxu0 %v1004
    %v1127 = vpop.f32.mrb[0].mxu0
    %v1128 = vadd.f32 0.0, %v1127
    %v1129 = vpop.f32.mrb[0].mxu0
    %1130 = vmatprep.mubr.f32.mxu0 0.0
    %1131 = vmatmul.mubr.f32.gmra.mrb[0].mxu0 %v1007
    %v1132 = vpop.f32.mrb[0].mxu0
    %v1133 = vadd.f32 0.0, %v1132
    %v1134 = vpop.f32.mrb[0].mxu0
    %1135 = vmatprep.mubr.f32.mxu0 0.0
    %1136 = vmatmul.mubr.f32.gmra.mrb[0].mxu0 %v1010
    %v1137 = vpop.f32.mrb[0].mxu0
    %v1138 = vadd.f32 0.0, %v1137
    %v1139 = vpop.f32.mrb[0].mxu0
    %1140 = vmatprep.mubr.f32.mxu0 0.0
    %1141 = vmatmul.mubr.f32.gmra.mrb[0].mxu0 %v1013
    %v1142 = vpop.f32.mrb[0].mxu0
    %v1143 = vadd.f32 0.0, %v1142
    %v1144 = vpop.f32.mrb[0].mxu0
    %1145 = vmatprep.mubr.f32.mxu0 0.0
    %1146 = vmatmul.mubr.f32.gmra.mrb[0].mxu0 %v1016
    %v1147 = vpop.f32.mrb[0].mxu0
    %v1148 = vadd.f32 0.0, %v1147
    %v1149 = vpop.f32.mrb[0].mxu0
    %1150 = vmatprep.mubr.f32.mxu0 0.0
    %1151 = vmatmul.mubr.f32.gmra.mrb[0].mxu0 %v1019
    %v1152 = vpop.f32.mrb[0].mxu0
    %v1153 = vadd.f32 0.0, %v1152
    %v1154 = vpop.f32.mrb[0].mxu0
    %1155 = vmatprep.mubr.f32.mxu0 0.0
    %1156 = vmatmul.mubr.f32.gmra.mrb[0].mxu0 %v1022
    %v1157 = vpop.f32.mrb[0].mxu0
    %v1158 = vadd.f32 0.0, %v1157
    %v1159 = vpop.f32.mrb[0].mxu0
    %1160 = vmatprep.mubr.f32.mxu0 0.0
    %1161 = vmatmul.mubr.f32.gmra.mrb[0].mxu0 %v1025
    %v1162 = vpop.f32.mrb[0].mxu0
    %v1163 = vadd.f32 0.0, %v1162
    %v1164 = vpop.f32.mrb[0].mxu0
    %1165 = vmatprep.mubr.f32.mxu0 0.0
    %1166 = vmatmul.mubr.f32.gmra.mrb[0].mxu0 %v1028
    %v1167 = vpop.f32.mrb[0].mxu0
    %v1168 = vadd.f32 0.0, %v1167
    %v1169 = vpop.f32.mrb[0].mxu0
    %1170 = vmatprep.mubr.f32.mxu0 0.0
    %1171 = vmatmul.mubr.f32.gmra.mrb[0].mxu0 %v1031
    %v1172 = vpop.f32.mrb[0].mxu0
    %v1173 = vadd.f32 0.0, %v1172
    %v1174 = vpop.f32.mrb[0].mxu0
    %1175 = vmatprep.mubr.f32.mxu0 0.0
    %1176 = vmatmul.mubr.f32.gmra.mrb[0].mxu0 %v1034
    %v1177 = vpop.f32.mrb[0].mxu0
    %v1178 = vadd.f32 0.0, %v1177
    %v1179 = vpop.f32.mrb[0].mxu0
    %1180 = vdwg.mxu0
    %v1181 = vadd.f32 %v951, %v1103
    %v1182 = vadd.f32 %v952, %v1108
    %v1183 = vadd.f32 %v953, %v1113
    %v1184 = vadd.f32 %v954, %v1118
    %v1185 = vadd.f32 %v955, %v1123
    %v1186 = vadd.f32 %v956, %v1128
    %v1187 = vadd.f32 %v957, %v1133
    %v1188 = vadd.f32 %v958, %v1138
    %v1189 = vadd.f32 %v959, %v1143
    %v1190 = vadd.f32 %v960, %v1148
    %v1191 = vadd.f32 %v961, %v1153
    %v1192 = vadd.f32 %v962, %v1158
    %v1193 = vadd.f32 %v963, %v1163
    %v1194 = vadd.f32 %v964, %v1168
    %v1195 = vadd.f32 %v965, %v1173
    %v1196 = vadd.f32 %v966, %v1178
    %v1197 = vld [vmem:[%s2] sm:$0x1]
    %v1199 = vlaneseq
    %v1200 = vshrl.u32 %v1199, 7
    %v1201 = vsub.s32 0, %v1200
    %v1202 = vrot.slane %v1197, %v1201
    %v1204 = vadd.f32 %v1181, %v1202
    %v1205 = vadd.f32 %v1182, %v1202
    %v1206 = vadd.f32 %v1183, %v1202
    %v1207 = vadd.f32 %v1184, %v1202
    %v1208 = vadd.f32 %v1185, %v1202
    %v1209 = vadd.f32 %v1186, %v1202
    %v1210 = vadd.f32 %v1187, %v1202
    %v1211 = vadd.f32 %v1188, %v1202
    %v1212 = vadd.f32 %v1189, %v1202
    %v1213 = vadd.f32 %v1190, %v1202
    %v1214 = vadd.f32 %v1191, %v1202
    %v1215 = vadd.f32 %v1192, %v1202
    %v1216 = vadd.f32 %v1193, %v1202
    %v1217 = vadd.f32 %v1194, %v1202
    %v1218 = vadd.f32 %v1195, %v1202
    %v1219 = vadd.f32 %v1196, %v1202
    %v1220 = vmax.f32 %v1204, 0.0
    %v1221 = vmax.f32 %v1205, 0.0
    %v1222 = vmax.f32 %v1206, 0.0
    %v1223 = vmax.f32 %v1207, 0.0
    %v1224 = vmax.f32 %v1208, 0.0
    %v1225 = vmax.f32 %v1209, 0.0
    %v1226 = vmax.f32 %v1210, 0.0
    %v1227 = vmax.f32 %v1211, 0.0
    %v1228 = vmax.f32 %v1212, 0.0
    %v1229 = vmax.f32 %v1213, 0.0
    %v1230 = vmax.f32 %v1214, 0.0
    %v1231 = vmax.f32 %v1215, 0.0
    %v1232 = vmax.f32 %v1216, 0.0
    %v1233 = vmax.f32 %v1217, 0.0
    %v1234 = vmax.f32 %v1218, 0.0
    %v1235 = vmax.f32 %v1219, 0.0
    %v1236 = vld [vmem:[#allocation7] sm:$0xff]
    %v1237 = vld [vmem:[#allocation7 + $0x8] sm:$0xff]
    %v1238 = vmul.f32 %v1220, %v1236
    %v1239 = vmul.f32 %v1221, %v1237
    %v1240 = vmul.f32 %v1222, %v1236
    %v1241 = vmul.f32 %v1223, %v1237
    %v1242 = vmul.f32 %v1224, %v1236
    %v1243 = vmul.f32 %v1225, %v1237
    %v1244 = vmul.f32 %v1226, %v1236
    %v1245 = vmul.f32 %v1227, %v1237
    %v1246 = vmul.f32 %v1228, %v1236
    %v1247 = vmul.f32 %v1229, %v1237
    %v1248 = vmul.f32 %v1230, %v1236
    %v1249 = vmul.f32 %v1231, %v1237
    %v1250 = vmul.f32 %v1232, %v1236
    %v1251 = vmul.f32 %v1233, %v1237
    %v1252 = vmul.f32 %v1234, %v1236
    %v1253 = vmul.f32 %v1235, %v1237
    %v1254 = vmax.f32 %v1238, %v1239
    %v1255 = vrot.slane %v1254, 4
    %v1256 = vmax.f32 %v1254, %v1255
    %v1257 = vrot.slane %v1256, 2
    %v1258 = vmax.f32 %v1256, %v1257
    %v1259 = vrot.slane %v1258, 1
    %v1260 = vmax.f32 %v1258, %v1259
    %v1261 = vmax.f32 %v1240, %v1241
    %v1262 = vrot.slane %v1261, 4
    %v1263 = vmax.f32 %v1261, %v1262
    %v1264 = vrot.slane %v1263, 2
    %v1265 = vmax.f32 %v1263, %v1264
    %v1266 = vrot.slane %v1265, 1
    %v1267 = vmax.f32 %v1265, %v1266
    %v1268 = vmax.f32 %v1242, %v1243
    %v1269 = vrot.slane %v1268, 4
    %v1270 = vmax.f32 %v1268, %v1269
    %v1271 = vrot.slane %v1270, 2
    %v1272 = vmax.f32 %v1270, %v1271
    %v1273 = vrot.slane %v1272, 1
    %v1274 = vmax.f32 %v1272, %v1273
    %v1275 = vmax.f32 %v1244, %v1245
    %v1276 = vrot.slane %v1275, 4
    %v1277 = vmax.f32 %v1275, %v1276
    %v1278 = vrot.slane %v1277, 2
    %v1279 = vmax.f32 %v1277, %v1278
    %v1280 = vrot.slane %v1279, 1
    %v1281 = vmax.f32 %v1279, %v1280
    %v1282 = vmax.f32 %v1246, %v1247
    %v1283 = vrot.slane %v1282, 4
    %v1284 = vmax.f32 %v1282, %v1283
    %v1285 = vrot.slane %v1284, 2
    %v1286 = vmax.f32 %v1284, %v1285
    %v1287 = vrot.slane %v1286, 1
    %v1288 = vmax.f32 %v1286, %v1287
    %v1289 = vmax.f32 %v1248, %v1249
    %v1290 = vrot.slane %v1289, 4
    %v1291 = vmax.f32 %v1289, %v1290
    %v1292 = vrot.slane %v1291, 2
    %v1293 = vmax.f32 %v1291, %v1292
    %v1294 = vrot.slane %v1293, 1
    %v1295 = vmax.f32 %v1293, %v1294
    %v1296 = vmax.f32 %v1250, %v1251
    %v1297 = vrot.slane %v1296, 4
    %v1298 = vmax.f32 %v1296, %v1297
    %v1299 = vrot.slane %v1298, 2
    %v1300 = vmax.f32 %v1298, %v1299
    %v1301 = vrot.slane %v1300, 1
    %v1302 = vmax.f32 %v1300, %v1301
    %v1303 = vmax.f32 %v1252, %v1253
    %v1304 = vrot.slane %v1303, 4
    %v1305 = vmax.f32 %v1303, %v1304
    %v1306 = vrot.slane %v1305, 2
    %v1307 = vmax.f32 %v1305, %v1306
    %v1308 = vrot.slane %v1307, 1
    %v1309 = vmax.f32 %v1307, %v1308
    %v1310 = vld [vmem:[#allocation8] sm:$0xff]
    %v1311 = vld [vmem:[#allocation8 + $0x8] sm:$0xff]
    %v1312 = vld [vmem:[#allocation8 + $0x10] sm:$0xff]
    %v1313 = vld [vmem:[#allocation8 + $0x18] sm:$0xff]
    %v1314 = vld [vmem:[#allocation8 + $0x20] sm:$0xff]
    %v1315 = vld [vmem:[#allocation8 + $0x28] sm:$0xff]
    %v1316 = vld [vmem:[#allocation8 + $0x30] sm:$0xff]
    %v1317 = vld [vmem:[#allocation8 + $0x38] sm:$0xff]
    %v1318 = vld [vmem:[#allocation8 + $0x40] sm:$0xff]
    %v1319 = vld [vmem:[#allocation8 + $0x48] sm:$0xff]
    %v1320 = vld [vmem:[#allocation8 + $0x50] sm:$0xff]
    %v1321 = vld [vmem:[#allocation8 + $0x58] sm:$0xff]
    %v1322 = vld [vmem:[#allocation8 + $0x60] sm:$0xff]
    %v1323 = vld [vmem:[#allocation8 + $0x68] sm:$0xff]
    %v1324 = vld [vmem:[#allocation8 + $0x70] sm:$0xff]
    %v1325 = vld [vmem:[#allocation8 + $0x78] sm:$0xff]
    %v1326 = vld [vmem:[#allocation8 + $0x80] sm:$0xff]
    %v1327 = vld [vmem:[#allocation8 + $0x88] sm:$0xff]
    %v1328 = vld [vmem:[#allocation8 + $0x90] sm:$0xff]
    %v1329 = vld [vmem:[#allocation8 + $0x98] sm:$0xff]
    %v1330 = vld [vmem:[#allocation8 + $0xa0] sm:$0xff]
    %v1331 = vld [vmem:[#allocation8 + $0xa8] sm:$0xff]
    %v1332 = vld [vmem:[#allocation8 + $0xb0] sm:$0xff]
    %v1333 = vld [vmem:[#allocation8 + $0xb8] sm:$0xff]
    %v1334 = vld [vmem:[#allocation8 + $0xc0] sm:$0xff]
    %v1335 = vld [vmem:[#allocation8 + $0xc8] sm:$0xff]
    %v1336 = vld [vmem:[#allocation8 + $0xd0] sm:$0xff]
    %v1337 = vld [vmem:[#allocation8 + $0xd8] sm:$0xff]
    %v1338 = vld [vmem:[#allocation8 + $0xe0] sm:$0xff]
    %v1339 = vld [vmem:[#allocation8 + $0xe8] sm:$0xff]
    %v1340 = vld [vmem:[#allocation8 + $0xf0] sm:$0xff]
    %v1341 = vld [vmem:[#allocation8 + $0xf8] sm:$0xff]
    %v1342 = vld [vmem:[%s5] sm:$0x3]
    %v1344 = vlaneseq
    %v1345 = vshrl.u32 %v1344, 7
    %v1346 = vsub.s32 0, %v1345
    %v1347 = vrot.slane %v1342, %v1346
    %v1348 = vlaneseq
    %v1349 = vshrl.u32 %v1348, 7
    %v1350 = vsub.s32 1, %v1349
    %v1351 = vrot.slane %v1342, %v1350
    %vm1362 = vcmask 1041409
    %v1363 = vsel %vm1362, %v1267, %v1260
    %vm1364 = vcmask 1042434
    %v1365 = vsel %vm1364, %v1274, %v1363
    %vm1366 = vcmask 1043459
    %v1367 = vsel %vm1366, %v1281, %v1365
    %vm1368 = vcmask 1044484
    %v1369 = vsel %vm1368, %v1288, %v1367
    %vm1370 = vcmask 1045509
    %v1371 = vsel %vm1370, %v1295, %v1369
    %vm1372 = vcmask 1046534
    %v1373 = vsel %vm1372, %v1302, %v1371
    %vm1374 = vcmask 1047559
    %v1375 = vsel %vm1374, %v1309, %v1373
    %1377 = vmatprep.subr.mxu0 %v1311
    %1378 = vmatpush1.msra.mxu0 %v1310
    %1379 = vmatprep.subr.mxu0 %v1313
    %1380 = vmatpush1.msra.mxu0 %v1312
    %1381 = vmatprep.subr.mxu0 %v1315
    %1382 = vmatpush1.msra.mxu0 %v1314
    %1383 = vmatprep.subr.mxu0 %v1317
    %1384 = vmatpush1.msra.mxu0 %v1316
    %1385 = vmatprep.subr.mxu0 %v1319
    %1386 = vmatpush1.msra.mxu0 %v1318
    %1387 = vmatprep.subr.mxu0 %v1321
    %1388 = vmatpush1.msra.mxu0 %v1320
    %1389 = vmatprep.subr.mxu0 %v1323
    %1390 = vmatpush1.msra.mxu0 %v1322
    %1391 = vmatprep.subr.mxu0 %v1325
    %1392 = vmatpush1.msra.mxu0 %v1324
    %1393 = vmatprep.subr.mxu0 %v1327
    %1394 = vmatpush1.msra.mxu0 %v1326
    %1395 = vmatprep.subr.mxu0 %v1329
    %1396 = vmatpush1.msra.mxu0 %v1328
    %1397 = vmatprep.subr.mxu0 %v1331
    %1398 = vmatpush1.msra.mxu0 %v1330
    %1399 = vmatprep.subr.mxu0 %v1333
    %1400 = vmatpush1.msra.mxu0 %v1332
    %1401 = vmatprep.subr.mxu0 %v1335
    %1402 = vmatpush1.msra.mxu0 %v1334
    %1403 = vmatprep.subr.mxu0 %v1337
    %1404 = vmatpush1.msra.mxu0 %v1336
    %1405 = vmatprep.subr.mxu0 %v1339
    %1406 = vmatpush1.msra.mxu0 %v1338
    %1407 = vmatprep.subr.mxu0 %v1341
    %1408 = vmatpush1.msra.mxu0 %v1340
    %1409 = vmatprep.subr.mxu0 0.0
    %1410 = vmatpush1.msra.mxu0 0.0
    %1411 = vmatprep.subr.mxu0 0.0
    %1412 = vmatpush1.msra.mxu0 0.0
    %1413 = vmatprep.subr.mxu0 0.0
    %1414 = vmatpush1.msra.mxu0 0.0
    %1415 = vmatprep.subr.mxu0 0.0
    %1416 = vmatpush1.msra.mxu0 0.0
    %1417 = vmatprep.subr.mxu0 0.0
    %1418 = vmatpush1.msra.mxu0 0.0
    %1419 = vmatprep.subr.mxu0 0.0
    %1420 = vmatpush1.msra.mxu0 0.0
    %1421 = vmatprep.subr.mxu0 0.0
    %1422 = vmatpush1.msra.mxu0 0.0
    %1423 = vmatprep.subr.mxu0 0.0
    %1424 = vmatpush1.msra.mxu0 0.0
    %1425 = vmatprep.subr.mxu0 0.0
    %1426 = vmatpush1.msra.mxu0 0.0
    %1427 = vmatprep.subr.mxu0 0.0
    %1428 = vmatpush1.msra.mxu0 0.0
    %1429 = vmatprep.subr.mxu0 0.0
    %1430 = vmatpush1.msra.mxu0 0.0
    %1431 = vmatprep.subr.mxu0 0.0
    %1432 = vmatpush1.msra.mxu0 0.0
    %1433 = vmatprep.subr.mxu0 0.0
    %1434 = vmatpush1.msra.mxu0 0.0
    %1435 = vmatprep.subr.mxu0 0.0
    %1436 = vmatpush1.msra.mxu0 0.0
    %1437 = vmatprep.subr.mxu0 0.0
    %1438 = vmatpush1.msra.mxu0 0.0
    %1439 = vmatprep.subr.mxu0 0.0
    %1440 = vmatpush1.msra.mxu0 0.0
    %1441 = vmatprep.mubr.f32.mxu0 0.0
    %1442 = vmatmul.mubr.f32.gmra.mrb[0].mxu0 %v1375
    %v1443 = vpop.f32.mrb[0].mxu0
    %v1444 = vadd.f32 %v1347, %v1443
    %v1445 = vpop.f32.mrb[0].mxu0
    %v1446 = vadd.f32 %v1351, %v1445
    %1447 = vdwg.mxu0
    %v1448 = vmax.f32 %v1444, %v1446
    %1449 = vmax.xlane.f32.xlu0 %v1448
    %v1450 = vpop.xlane.xlu0 %1449
    %v1451 = vsub.f32 %v1444, %v1450
    %v1452 = vsub.f32 %v1446, %v1450
    %v1453 = vmul.f32 %v1451, 1.442695
    %v1454 = vpow.pop %v1453
    %v1455 = vmul.f32 %v1452, 1.442695
    %v1456 = vpow.pop %v1455
    %v1457 = vadd.f32 %v1454, %v1456
    %1458 = vadd.xlane.f32.xlu0 %v1457
    %v1459 = vpop.xlane.xlu0 %1458
    %v1460 = vrcp.pop %v1459
    %v1461 = vmul.f32 %v1454, %v1460
    %v1462 = vmul.f32 %v1456, %v1460
    %1463 = vst [vmem:[#allocation10] sm:$0xff] %v1461
    %1464 = vst [vmem:[#allocation10 + $0x8] sm:$0xff] %v1462
    // Predicated region
    $region42: #{tpu_custom_call.1} parent=1 // pred_check
      _
    $region43: #{tpu_custom_call.1} parent=1 // pred_check_branch
      %1466 = sbr.rel (0) target = $region45
    $region44: #{tpu_custom_call.1} parent=1 // pred_region
      %s1468 = ssub.s32 256, 256
      %1469 = vsyncadd [#allocation4], %s1468
      %s1471 = sshll.u32 [#allocation10], 4
      %s1472 = int_to_ptr.vmem [resolvable:$true] %s1471
      %1474 = dma.vmem_to_hbm [thread:$0]  %s1472, 256, %s6, [#allocation4]
    $region45: #{tpu_custom_call.1} parent=1 // pred_fallthru
      _
    // Predicated region
    $region46: #{tpu_custom_call.1} parent=1 // pred_check
      _
    $region47: #{tpu_custom_call.1} parent=1 // pred_check_branch
      %1476 = sbr.rel (0) target = $region49
    $region48: #{tpu_custom_call.1} parent=1 // pred_region
      %1477 = dma.done [#allocation4], 256
    $region49: #{tpu_custom_call.1} parent=1 // pred_fallthru
      _
    %1478 = vsyncpa [#allocation3], 1
    %1479 = vsyncpa [#allocation6], 1
    %1480 = vsyncpa [#allocation9], 1
    %1481 = vsyncpa [#allocation4], 1

</llo_original>
